<compile_context>
chip_gen: v6e
topology: v6e:2x2x1
jax: 0.10.0
libtpu: 0.0.40
codegen_flags: <defaults>
</compile_context>

<pallas_src>
import math
import functools

import jax
import jax.numpy as jnp
from jax.experimental import pallas as pl
from jax.experimental.pallas import tpu as pltpu

LANE = 128


def _round_up(n, m):
    return (n + m - 1) // m * m


def backward_map_kernel(x_ref, w1_ref, b1_ref, g_ref, beta_ref,
                        w2_ref, b2_ref, w3_ref, b3_ref, o_ref,
                        *, hidden_true, z_true, mm_dtype):
    # Activations live in f32; only MXU operands are cast to mm_dtype (bf16),
    # accumulation stays f32 via preferred_element_type.
    x = x_ref[...]

    # --- Linear(goal_dim -> hidden_dim) ---
    h = jnp.dot(x.astype(mm_dtype), w1_ref[...],
                preferred_element_type=jnp.float32) + b1_ref[...]

    # --- LayerNorm(hidden_dim), eps = 1e-5 (PyTorch default) ---
    # Padded hidden lanes of h are exactly zero (zero-padded w1/b1), so the sum
    # is correct; only the variance needs masking when hidden is padded.
    hp = h.shape[-1]
    inv_h = jnp.float32(1.0 / hidden_true)
    mean = jnp.sum(h, axis=-1, keepdims=True) * inv_h
    centered = h - mean
    if hp != hidden_true:
        lane_ok = jax.lax.broadcasted_iota(jnp.int32, (1, hp), 1) < hidden_true
        sq = jnp.where(lane_ok, centered * centered, 0.0)
    else:
        sq = centered * centered
    var = jnp.sum(sq, axis=-1, keepdims=True) * inv_h
    rstd = jax.lax.rsqrt(var + 1e-5)
    # gamma folded into the rstd factor; padded gamma/beta lanes are zero, so
    # padded hidden lanes come out exactly zero again.
    h = centered * (rstd * g_ref[...]) + beta_ref[...]

    # --- Tanh ---
    h = jnp.tanh(h)

    # --- Linear(hidden_dim -> hidden_dim) + ReLU  (hidden_layers - 1 = 1 block) ---
    h = jnp.dot(h.astype(mm_dtype), w2_ref[...],
                preferred_element_type=jnp.float32) + b2_ref[...]
    h = jnp.maximum(h, 0.0)

    # --- Linear(hidden_dim -> z_dim) ---
    z = jnp.dot(h.astype(mm_dtype), w3_ref[...],
                preferred_element_type=jnp.float32) + b3_ref[...]

    # --- Norm(): sqrt(z_dim) * F.normalize(z, dim=-1) ---
    # rsqrt on the squared norm (EUP) instead of sqrt + divide; clamp on the
    # squared norm (1e-24) matches the 1e-12 clamp on the norm.
    sumsq = jnp.sum(z * z, axis=-1, keepdims=True)
    scale = jnp.sqrt(jnp.float32(z_true)) * jax.lax.rsqrt(
        jnp.maximum(sumsq, 1e-24))
    o_ref[...] = (z * scale).astype(o_ref.dtype)


def backward_map(x, params, *, tile_m=256, use_bf16=True):
    """x: (batch, goal_dim) float32. params: dict of weights (see init_params)."""
    B, G = x.shape
    H = params["w1"].shape[1]
    Z = params["w3"].shape[1]

    # Lane-dense padded feature dims and batch-tile padding.
    Gp = _round_up(G, LANE)
    Hp = _round_up(H, LANE)
    Zp = _round_up(Z, LANE)
    tile_m = _round_up(min(tile_m, _round_up(B, 8)), 8)
    Bp = _round_up(B, tile_m)

    mm_dtype = jnp.bfloat16 if use_bf16 else jnp.float32

    def pad2(a, rows, cols):
        return jnp.pad(a, ((0, rows - a.shape[0]), (0, cols - a.shape[1])))

    xp = pad2(x.astype(jnp.float32), Bp, Gp)
    w1 = pad2(params["w1"], Gp, Hp).astype(mm_dtype)
    w2 = pad2(params["w2"], Hp, Hp).astype(mm_dtype)
    w3 = pad2(params["w3"], Hp, Zp).astype(mm_dtype)
    b1 = pad2(params["b1"], 1, Hp)
    b2 = pad2(params["b2"], 1, Hp)
    b3 = pad2(params["b3"], 1, Zp)
    ln_g = pad2(params["ln_g"], 1, Hp)
    ln_b = pad2(params["ln_b"], 1, Hp)

    grid = (Bp // tile_m,)

    def bcast(shape):  # full-array block, same for every grid step
        return pl.BlockSpec(shape, lambda i: tuple(0 for _ in shape))

    # Advisory cost estimate for XLA scheduling around the custom call.
    w_item = 2 if use_bf16 else 4
    flops = 2 * Bp * (Gp * Hp + Hp * Hp + Hp * Zp)
    bytes_accessed = (xp.size * 4
                      + (w1.size + w2.size + w3.size) * w_item
                      + (b1.size + b2.size + b3.size + ln_g.size + ln_b.size) * 4
                      + Bp * Zp * 4)
    cost = pl.CostEstimate(flops=flops, transcendentals=Bp * Hp,
                           bytes_accessed=bytes_accessed)

    # Explicit VMEM budget: double-buffered x/out tiles + broadcast weights
    # + activation temporaries, with 2x headroom (clamped to v7x physical).
    raw = (2 * (tile_m * Gp + tile_m * Zp) * 4
           + 2 * (w1.size + w2.size + w3.size) * w_item
           + 2 * (b1.size + b2.size + b3.size + ln_g.size + ln_b.size) * 4
           + 4 * tile_m * Hp * 4)
    vmem_limit = int(min(64 * 1024 * 1024, max(32 * 1024 * 1024, 2 * raw)))

    kernel = functools.partial(backward_map_kernel,
                               hidden_true=H, z_true=Z, mm_dtype=mm_dtype)

    out = pl.pallas_call(
        kernel,
        out_shape=jax.ShapeDtypeStruct((Bp, Zp), jnp.float32),
        grid_spec=pltpu.PrefetchScalarGridSpec(
            num_scalar_prefetch=0,
            grid=grid,
            in_specs=[
                pl.BlockSpec((tile_m, Gp), lambda i: (i, 0)),   # x
                bcast((Gp, Hp)),                                # w1
                bcast((1, Hp)),                                 # b1
                bcast((1, Hp)),                                 # ln gamma
                bcast((1, Hp)),                                 # ln beta
                bcast((Hp, Hp)),                                # w2
                bcast((1, Hp)),                                 # b2
                bcast((Hp, Zp)),                                # w3
                bcast((1, Zp)),                                 # b3
            ],
            out_specs=pl.BlockSpec((tile_m, Zp), lambda i: (i, 0)),
        ),
        compiler_params=pltpu.CompilerParams(
            dimension_semantics=("parallel",),
            vmem_limit_bytes=vmem_limit),
        cost_estimate=cost,
    )(xp, w1, b1, ln_g, ln_b, w2, b2, w3, b3)

    return out[:B, :Z]


def init_params(key, goal_dim, z_dim, hidden_dim):
    """Deterministic synthetic init (not a checkpoint load)."""
    ks = jax.random.split(key, 6)

    def lin(kw, kb, fan_in, fan_out):
        bound = 1.0 / math.sqrt(fan_in)
        w = jax.random.uniform(kw, (fan_in, fan_out), jnp.float32, -bound, bound)
        b = jax.random.uniform(kb, (1, fan_out), jnp.float32, -bound, bound)
        return w, b

    w1, b1 = lin(ks[0], ks[1], goal_dim, hidden_dim)
    w2, b2 = lin(ks[2], ks[3], hidden_dim, hidden_dim)
    w3, b3 = lin(ks[4], ks[5], hidden_dim, z_dim)
    return {
        "w1": w1, "b1": b1,
        "ln_g": jnp.ones((1, hidden_dim), jnp.float32),   # nn.LayerNorm default
        "ln_b": jnp.zeros((1, hidden_dim), jnp.float32),
        "w2": w2, "b2": b2,
        "w3": w3, "b3": b3,
    }


def reference_forward(x, p, mm_dtype=jnp.float32):
    """Plain-JAX reference mirroring the PyTorch module (optionally bf16 dots)."""
    def d(a, b):
        return jnp.dot(a.astype(mm_dtype), b.astype(mm_dtype),
                       preferred_element_type=jnp.float32)
    h = d(x, p["w1"]) + p["b1"]
    mean = jnp.mean(h, axis=-1, keepdims=True)
    var = jnp.mean((h - mean) ** 2, axis=-1, keepdims=True)
    h = (h - mean) / jnp.sqrt(var + 1e-5) * p["ln_g"] + p["ln_b"]
    h = jnp.tanh(h)
    h = jnp.maximum(d(h, p["w2"]) + p["b2"], 0.0)
    z = d(h, p["w3"]) + p["b3"]
    nrm = jnp.linalg.norm(z, axis=-1, keepdims=True)
    return math.sqrt(z.shape[-1]) * z / jnp.maximum(nrm, 1e-12)


if __name__ == "__main__":
    # Small shapes implied by the module (flat feature vectors per batch row).
    # hidden_dim=128 is lane-dense; goal/z dims get zero-padded to 128 inside
    # the wrapper; batch 300 exercises the cdiv/pad tail path and a 2-step grid.
    batch, goal_dim, z_dim, hidden_dim = 300, 16, 32, 128

    key = jax.random.PRNGKey(0)
    k_x, k_p = jax.random.split(key)
    x = jax.random.normal(k_x, (batch, goal_dim), jnp.float32)
    params = init_params(k_p, goal_dim, z_dim, hidden_dim)

    out = backward_map(x, params, tile_m=256, use_bf16=True)
    out = jax.block_until_ready(out)
    assert out.shape == (batch, z_dim)

    # Tight check against a reference that uses the same bf16 matmul operands.
    ref_bf16 = reference_forward(x, params, jnp.bfloat16)
    assert jnp.allclose(out, ref_bf16, atol=2e-3, rtol=2e-3), "mismatch vs bf16 reference"

    # Looser check against the full-f32 PyTorch-semantics reference
    # (tolerance relaxed because the kernel feeds bf16 operands to the MXU).
    ref_f32 = reference_forward(x, params, jnp.float32)
    assert jnp.allclose(out, ref_f32, atol=5e-2, rtol=5e-2), "mismatch vs f32 reference"

    print("KERNEL_OK")
</pallas_src>

<mosaic_0001>
module attributes {stable_mosaic.version = 11 : i64} {
  func.func @backward_map_kernel(%arg0: i32, %arg1: memref<256x128xf32, #tpu.memory_space<vmem>>, %arg2: memref<128x128xbf16, #tpu.memory_space<vmem>>, %arg3: memref<1x128xf32, #tpu.memory_space<vmem>>, %arg4: memref<1x128xf32, #tpu.memory_space<vmem>>, %arg5: memref<1x128xf32, #tpu.memory_space<vmem>>, %arg6: memref<128x128xbf16, #tpu.memory_space<vmem>>, %arg7: memref<1x128xf32, #tpu.memory_space<vmem>>, %arg8: memref<128x128xbf16, #tpu.memory_space<vmem>>, %arg9: memref<1x128xf32, #tpu.memory_space<vmem>>, %arg10: memref<256x128xf32, #tpu.memory_space<vmem>>) attributes {dimension_semantics = [#tpu.dimension_semantics<parallel>], iteration_bounds = array<i64: 2>, scalar_prefetch = 0 : i64, scratch_operands = 0 : i64, tpu.core_type = #tpu.core_type<tc>, window_params = [{transform_indices = @transform_0, window_bounds = array<i64: 256, 128>}, {pipeline_mode = #tpu.pipeline_mode<synchronous>, transform_indices = @transform_1, window_bounds = array<i64: 128, 128>}, {pipeline_mode = #tpu.pipeline_mode<synchronous>, transform_indices = @transform_2, window_bounds = array<i64: 1, 128>}, {pipeline_mode = #tpu.pipeline_mode<synchronous>, transform_indices = @transform_3, window_bounds = array<i64: 1, 128>}, {pipeline_mode = #tpu.pipeline_mode<synchronous>, transform_indices = @transform_4, window_bounds = array<i64: 1, 128>}, {pipeline_mode = #tpu.pipeline_mode<synchronous>, transform_indices = @transform_5, window_bounds = array<i64: 128, 128>}, {pipeline_mode = #tpu.pipeline_mode<synchronous>, transform_indices = @transform_6, window_bounds = array<i64: 1, 128>}, {pipeline_mode = #tpu.pipeline_mode<synchronous>, transform_indices = @transform_7, window_bounds = array<i64: 128, 128>}, {pipeline_mode = #tpu.pipeline_mode<synchronous>, transform_indices = @transform_8, window_bounds = array<i64: 1, 128>}, {transform_indices = @transform_9, window_bounds = array<i64: 256, 128>}]} {
    %c0 = arith.constant 0 : index
    %c0_0 = arith.constant 0 : index
    %0 = vector.load %arg1[%c0, %c0_0] : memref<256x128xf32, #tpu.memory_space<vmem>>, vector<256x128xf32>
    %1 = arith.truncf %0 : vector<256x128xf32> to vector<256x128xbf16>
    %c0_1 = arith.constant 0 : index
    %c0_2 = arith.constant 0 : index
    %2 = vector.load %arg2[%c0_1, %c0_2] : memref<128x128xbf16, #tpu.memory_space<vmem>>, vector<128x128xbf16>
    %cst = arith.constant dense<0.000000e+00> : vector<256x128xf32>
    %3 = tpu.matmul %1, %2, %cst {dimension_numbers = #tpu.dot_dimension_numbers<[1], [0], [0], [1], [0, 0, 1, 1], [], []>} : vector<256x128xbf16>, vector<128x128xbf16>, vector<256x128xf32> -> vector<256x128xf32>
    %c0_3 = arith.constant 0 : index
    %c0_4 = arith.constant 0 : index
    %4 = vector.load %arg3[%c0_3, %c0_4] : memref<1x128xf32, #tpu.memory_space<vmem>>, vector<1x128xf32>
    %5 = vector.broadcast %4 : vector<1x128xf32> to vector<256x128xf32>
    %6 = arith.addf %3, %5 : vector<256x128xf32>
    %cst_5 = arith.constant dense<0.000000e+00> : vector<256xf32>
    %7 = vector.multi_reduction <add>, %6, %cst_5 [1] : vector<256x128xf32> to vector<256xf32>
    %8 = vector.shape_cast %7 : vector<256xf32> to vector<256x1xf32>
    %cst_6 = arith.constant 7.812500e-03 : f32
    %9 = vector.broadcast %cst_6 : f32 to vector<256x1xf32>
    %10 = arith.mulf %8, %9 : vector<256x1xf32>
    %11 = vector.broadcast %10 : vector<256x1xf32> to vector<256x128xf32>
    %12 = arith.subf %6, %11 : vector<256x128xf32>
    %13 = arith.mulf %12, %12 : vector<256x128xf32>
    %cst_7 = arith.constant dense<0.000000e+00> : vector<256xf32>
    %14 = vector.multi_reduction <add>, %13, %cst_7 [1] : vector<256x128xf32> to vector<256xf32>
    %15 = vector.shape_cast %14 : vector<256xf32> to vector<256x1xf32>
    %cst_8 = arith.constant 7.812500e-03 : f32
    %16 = vector.broadcast %cst_8 : f32 to vector<256x1xf32>
    %17 = arith.mulf %15, %16 : vector<256x1xf32>
    %cst_9 = arith.constant 9.99999974E-6 : f32
    %18 = vector.broadcast %cst_9 : f32 to vector<256x1xf32>
    %19 = arith.addf %17, %18 : vector<256x1xf32>
    %20 = math.rsqrt %19 : vector<256x1xf32>
    %c0_10 = arith.constant 0 : index
    %c0_11 = arith.constant 0 : index
    %21 = vector.load %arg4[%c0_10, %c0_11] : memref<1x128xf32, #tpu.memory_space<vmem>>, vector<1x128xf32>
    %22 = vector.broadcast %20 : vector<256x1xf32> to vector<256x128xf32>
    %23 = vector.broadcast %21 : vector<1x128xf32> to vector<256x128xf32>
    %24 = arith.mulf %22, %23 : vector<256x128xf32>
    %25 = arith.mulf %12, %24 : vector<256x128xf32>
    %c0_12 = arith.constant 0 : index
    %c0_13 = arith.constant 0 : index
    %26 = vector.load %arg5[%c0_12, %c0_13] : memref<1x128xf32, #tpu.memory_space<vmem>>, vector<1x128xf32>
    %27 = vector.broadcast %26 : vector<1x128xf32> to vector<256x128xf32>
    %28 = arith.addf %25, %27 : vector<256x128xf32>
    %29 = math.tanh %28 : vector<256x128xf32>
    %30 = arith.truncf %29 : vector<256x128xf32> to vector<256x128xbf16>
    %c0_14 = arith.constant 0 : index
    %c0_15 = arith.constant 0 : index
    %31 = vector.load %arg6[%c0_14, %c0_15] : memref<128x128xbf16, #tpu.memory_space<vmem>>, vector<128x128xbf16>
    %cst_16 = arith.constant dense<0.000000e+00> : vector<256x128xf32>
    %32 = tpu.matmul %30, %31, %cst_16 {dimension_numbers = #tpu.dot_dimension_numbers<[1], [0], [0], [1], [0, 0, 1, 1], [], []>} : vector<256x128xbf16>, vector<128x128xbf16>, vector<256x128xf32> -> vector<256x128xf32>
    %c0_17 = arith.constant 0 : index
    %c0_18 = arith.constant 0 : index
    %33 = vector.load %arg7[%c0_17, %c0_18] : memref<1x128xf32, #tpu.memory_space<vmem>>, vector<1x128xf32>
    %34 = vector.broadcast %33 : vector<1x128xf32> to vector<256x128xf32>
    %35 = arith.addf %32, %34 : vector<256x128xf32>
    %cst_19 = arith.constant 0.000000e+00 : f32
    %36 = vector.broadcast %cst_19 : f32 to vector<256x128xf32>
    %37 = arith.maximumf %35, %36 : vector<256x128xf32>
    %38 = arith.truncf %37 : vector<256x128xf32> to vector<256x128xbf16>
    %c0_20 = arith.constant 0 : index
    %c0_21 = arith.constant 0 : index
    %39 = vector.load %arg8[%c0_20, %c0_21] : memref<128x128xbf16, #tpu.memory_space<vmem>>, vector<128x128xbf16>
    %cst_22 = arith.constant dense<0.000000e+00> : vector<256x128xf32>
    %40 = tpu.matmul %38, %39, %cst_22 {dimension_numbers = #tpu.dot_dimension_numbers<[1], [0], [0], [1], [0, 0, 1, 1], [], []>} : vector<256x128xbf16>, vector<128x128xbf16>, vector<256x128xf32> -> vector<256x128xf32>
    %c0_23 = arith.constant 0 : index
    %c0_24 = arith.constant 0 : index
    %41 = vector.load %arg9[%c0_23, %c0_24] : memref<1x128xf32, #tpu.memory_space<vmem>>, vector<1x128xf32>
    %42 = vector.broadcast %41 : vector<1x128xf32> to vector<256x128xf32>
    %43 = arith.addf %40, %42 : vector<256x128xf32>
    %44 = arith.mulf %43, %43 : vector<256x128xf32>
    %cst_25 = arith.constant dense<0.000000e+00> : vector<256xf32>
    %45 = vector.multi_reduction <add>, %44, %cst_25 [1] : vector<256x128xf32> to vector<256xf32>
    %46 = vector.shape_cast %45 : vector<256xf32> to vector<256x1xf32>
    %cst_26 = arith.constant 3.200000e+01 : f32
    %47 = math.sqrt %cst_26 : f32
    %cst_27 = arith.constant 1.000000e-24 : f32
    %48 = vector.broadcast %cst_27 : f32 to vector<256x1xf32>
    %49 = arith.maximumf %46, %48 : vector<256x1xf32>
    %50 = math.rsqrt %49 : vector<256x1xf32>
    %51 = vector.broadcast %47 : f32 to vector<256x1xf32>
    %52 = arith.mulf %51, %50 : vector<256x1xf32>
    %53 = vector.broadcast %52 : vector<256x1xf32> to vector<256x128xf32>
    %54 = arith.mulf %43, %53 : vector<256x128xf32>
    %c0_28 = arith.constant 0 : index
    %c0_29 = arith.constant 0 : index
    %55 = vector.load %arg10[%c0_28, %c0_29] : memref<256x128xf32, #tpu.memory_space<vmem>>, vector<256x128xf32>
    tpu.vector_store %arg10[%c0_28, %c0_29], %54 {strides = array<i32>} : memref<256x128xf32, #tpu.memory_space<vmem>>, vector<256x128xf32>,
    return
  }
  func.func @transform_0(%arg0: i32) -> (i32, i32) {
    %c0_i32 = arith.constant 0 : i32
    %c0_i32_0 = arith.constant 0 : i32
    return %arg0, %c0_i32 : i32, i32
  }
  func.func @transform_1(%arg0: i32) -> (i32, i32) {
    %c0_i32 = arith.constant 0 : i32
    %c0_i32_0 = arith.constant 0 : i32
    %c0_i32_1 = arith.constant 0 : i32
    return %c0_i32, %c0_i32_0 : i32, i32
  }
  func.func @transform_2(%arg0: i32) -> (i32, i32) {
    %c0_i32 = arith.constant 0 : i32
    %c0_i32_0 = arith.constant 0 : i32
    %c0_i32_1 = arith.constant 0 : i32
    return %c0_i32, %c0_i32_0 : i32, i32
  }
  func.func @transform_3(%arg0: i32) -> (i32, i32) {
    %c0_i32 = arith.constant 0 : i32
    %c0_i32_0 = arith.constant 0 : i32
    %c0_i32_1 = arith.constant 0 : i32
    return %c0_i32, %c0_i32_0 : i32, i32
  }
  func.func @transform_4(%arg0: i32) -> (i32, i32) {
    %c0_i32 = arith.constant 0 : i32
    %c0_i32_0 = arith.constant 0 : i32
    %c0_i32_1 = arith.constant 0 : i32
    return %c0_i32, %c0_i32_0 : i32, i32
  }
  func.func @transform_5(%arg0: i32) -> (i32, i32) {
    %c0_i32 = arith.constant 0 : i32
    %c0_i32_0 = arith.constant 0 : i32
    %c0_i32_1 = arith.constant 0 : i32
    return %c0_i32, %c0_i32_0 : i32, i32
  }
  func.func @transform_6(%arg0: i32) -> (i32, i32) {
    %c0_i32 = arith.constant 0 : i32
    %c0_i32_0 = arith.constant 0 : i32
    %c0_i32_1 = arith.constant 0 : i32
    return %c0_i32, %c0_i32_0 : i32, i32
  }
  func.func @transform_7(%arg0: i32) -> (i32, i32) {
    %c0_i32 = arith.constant 0 : i32
    %c0_i32_0 = arith.constant 0 : i32
    %c0_i32_1 = arith.constant 0 : i32
    return %c0_i32, %c0_i32_0 : i32, i32
  }
  func.func @transform_8(%arg0: i32) -> (i32, i32) {
    %c0_i32 = arith.constant 0 : i32
    %c0_i32_0 = arith.constant 0 : i32
    %c0_i32_1 = arith.constant 0 : i32
    return %c0_i32, %c0_i32_0 : i32, i32
  }
  func.func @transform_9(%arg0: i32) -> (i32, i32) {
    %c0_i32 = arith.constant 0 : i32
    %c0_i32_0 = arith.constant 0 : i32
    return %arg0, %c0_i32 : i32, i32
  }
}

</mosaic_0001>

<llo_original>
// kernel: tpu_custom_call.1
$region0: #{tpu_custom_call.1}
  #allocation0 [shape = 'u32[]', space=smem, size = 0x4, offset = 0x4, fixed_abs, tag = 'smem constant byte address 0x4 - core index']
  #allocation1 [shape = 'u32[144,128]{1,0:T(1,128)}', space=vmem, size = 0x12000, scoped, tag = 'internal scratch']
  %s0 = inlined_call_operand.hbm [shape: f32[512,128], index: 0, kind: input, shape index: {}]
  %s1 = inlined_call_operand.hbm [shape: bf16[128,128], index: 1, kind: input, shape index: {}]
  %s2 = inlined_call_operand.vmem [shape: f32[1,128], index: 2, kind: input, shape index: {}]
  %s3 = inlined_call_operand.vmem [shape: f32[1,128], index: 3, kind: input, shape index: {}]
  %s4 = inlined_call_operand.vmem [shape: f32[1,128], index: 4, kind: input, shape index: {}]
  %s5 = inlined_call_operand.hbm [shape: bf16[128,128], index: 5, kind: input, shape index: {}]
  %s6 = inlined_call_operand.vmem [shape: f32[1,128], index: 6, kind: input, shape index: {}]
  %s7 = inlined_call_operand.hbm [shape: bf16[128,128], index: 7, kind: input, shape index: {}]
  %s8 = inlined_call_operand.vmem [shape: f32[1,128], index: 8, kind: input, shape index: {}]
  %s9 = inlined_call_operand.hbm [shape: f32[512,128], index: 9, kind: output, shape index: {}]
  %s10 = sld [smem:[#allocation0]]
  $region85: #{tpu_custom_call.1} parent=0
    _
  %s12 = ssub.s32 1, %s10
  %s13 = scalar_select 0, %s12, %s10
  $region1: #{tpu_custom_call.1} parent=0
    #allocation2 [shape = 'u8[262144]{0}', space=vmem, size = 0x40000, scoped, tag = 'input window, operand 0']
    #allocation3 [shape = 's32[2]{0}', space=sflag, size = 0x8, scoped, tag = 'scoped memory for tpu_custom_call.1']
    #allocation4 [shape = 's32[2]{0}', space=sflag, size = 0x8, scoped, tag = 'scoped memory for tpu_custom_call.1']
    #allocation5 [shape = 'u8[32768]{0}', space=vmem, size = 0x8000, scoped, tag = 'input window, operand 1, single buffered']
    #allocation6 [shape = 's32[1]{0}', space=sflag, size = 0x4, scoped, tag = 'scoped memory for tpu_custom_call.1']
    #allocation7 [shape = 'u8[32768]{0}', space=vmem, size = 0x8000, scoped, tag = 'input window, operand 5, single buffered']
    #allocation8 [shape = 'u8[32768]{0}', space=vmem, size = 0x8000, scoped, tag = 'input window, operand 7, single buffered']
    #allocation9 [shape = 's32[1]{0}', space=sflag, size = 0x4, scoped, tag = 'scoped memory for tpu_custom_call.1']
    #allocation10 [shape = 'u8[262144]{0}', space=vmem, size = 0x40000, scoped, tag = 'output window, operand 0']
    %14 = vsyncpa [#allocation3], 0
    %s15 = scalar_lea.sflag [#allocation3], 1
    %16 = vsyncpa %s15, 0
    %17 = vsyncpa [#allocation6], 0
    %18 = vsyncpa [#allocation9], 0
    %19 = vsyncpa [#allocation4], 0
    %s20 = scalar_lea.sflag [#allocation4], 1
    %21 = vsyncpa %s20, 0
    loop: start=0, step=1, limit=4
    $region2: #{tpu_custom_call.1} parent=1 // loop_pre_header
      _
    $region3: #{tpu_custom_call.1} parent=1 // loop_header
      %s23 = sphi 0, %s27
      %p24 = scmp.ge.s32.totalorder %s23, 4
      %s33 = sphi 0, %s35
      %s36 = sphi 0, %s33
      %s37 = sphi 0, %s36
      %s53 = sphi 0, %s37
      %s57 = sphi 0, %s57
      %s59 = sphi 0, %s57
      %s60 = sphi 0, %s59
      %s74 = sphi 0, %s60
      %s78 = sphi 0, %s78
      %s80 = sphi 0, %s78
      %s81 = sphi 0, %s80
      %s95 = sphi 0, %s81
      %s99 = sphi 0, %s99
      %s101 = sphi 0, %s99
      %s102 = sphi 0, %s101
      %s116 = sphi 0, %s102
      %s120 = sphi 0, %s120
      %s122 = sphi 0, %s120
      %s123 = sphi 0, %s122
      %s137 = sphi 0, %s123
      %s141 = sphi 0, %s141
      %s143 = sphi 0, %s141
      %s144 = sphi 0, %s143
      %s158 = sphi 0, %s144
      %s162 = sphi 0, %s162
      %s164 = sphi 0, %s162
      %s165 = sphi 0, %s164
      %s179 = sphi 0, %s165
      %s183 = sphi 0, %s183
      %s185 = sphi 0, %s183
      %s186 = sphi 0, %s185
      %s200 = sphi 0, %s186
      %s204 = sphi 0, %s204
      %s206 = sphi 0, %s204
      %s207 = sphi 0, %s206
      %s221 = sphi 0, %s207
      %s227 = sphi 0, %s229
      %s230 = sphi 0, %s227
      %s231 = sphi 0, %s230
      %s247 = sphi 0, %s231
    $region4: #{tpu_custom_call.1} parent=1 // loop_header_branch
      %26 = sbr.rel (%p24) target = $region8
    $region5: #{tpu_custom_call.1} parent=1 // loop_body
      %s28 = ssub.s32 %s23, 1
      %s29 = ssub.s32 %s23, 2
      %s30 = sadd.s32 %s23, 1
      %s31 = ssub.s32 %s23, %s30
      %p32 = scmp.eq.s32.totalorder %s31, 0
      %s34 = sadd.s32 %s33, 1
      %s35 = scalar_select %p32, %s33, %s34
      %p38 = pneg %p32
      %p39 = scmp.eq.s32.totalorder %s23, 1
      %p40 = por %p38, %p39
      %p41 = scmp.ne.s32.totalorder %s33, %s36
      %p42 = scmp.eq.s32.totalorder %s23, 0
      %p43 = por %p41, %p42
      %p44 = scmp.ne.s32.totalorder %s33, %s36
      %p45 = scmp.eq.s32.totalorder %s28, 1
      %p46 = por %p44, %p45
      %p47 = scmp.ne.s32.totalorder %s36, %s37
      %p48 = scmp.eq.s32.totalorder %s28, 0
      %p49 = por %p47, %p48
      %p50 = scmp.ne.s32.totalorder %s36, %s37
      %p51 = scmp.eq.s32.totalorder %s29, 1
      %p52 = por %p50, %p51
      %p54 = scmp.ne.s32.totalorder %s37, %s53
      %p55 = scmp.eq.s32.totalorder %s29, 0
      %p56 = por %p54, %p55
      %s58 = sadd.s32 %s57, 1
      %p61 = scmp.eq.s32.totalorder %s23, 1
      %p62 = scmp.ne.s32.totalorder %s57, %s59
      %p63 = scmp.eq.s32.totalorder %s23, 0
      %p64 = por %p62, %p63
      %p65 = scmp.ne.s32.totalorder %s57, %s59
      %p66 = scmp.eq.s32.totalorder %s28, 1
      %p67 = por %p65, %p66
      %p68 = scmp.ne.s32.totalorder %s59, %s60
      %p69 = scmp.eq.s32.totalorder %s28, 0
      %p70 = por %p68, %p69
      %p71 = scmp.ne.s32.totalorder %s59, %s60
      %p72 = scmp.eq.s32.totalorder %s29, 1
      %p73 = por %p71, %p72
      %p75 = scmp.ne.s32.totalorder %s60, %s74
      %p76 = scmp.eq.s32.totalorder %s29, 0
      %p77 = por %p75, %p76
      %s79 = sadd.s32 %s78, 1
      %p82 = scmp.eq.s32.totalorder %s23, 1
      %p83 = scmp.ne.s32.totalorder %s78, %s80
      %p84 = scmp.eq.s32.totalorder %s23, 0
      %p85 = por %p83, %p84
      %p86 = scmp.ne.s32.totalorder %s78, %s80
      %p87 = scmp.eq.s32.totalorder %s28, 1
      %p88 = por %p86, %p87
      %p89 = scmp.ne.s32.totalorder %s80, %s81
      %p90 = scmp.eq.s32.totalorder %s28, 0
      %p91 = por %p89, %p90
      %p92 = scmp.ne.s32.totalorder %s80, %s81
      %p93 = scmp.eq.s32.totalorder %s29, 1
      %p94 = por %p92, %p93
      %p96 = scmp.ne.s32.totalorder %s81, %s95
      %p97 = scmp.eq.s32.totalorder %s29, 0
      %p98 = por %p96, %p97
      %s100 = sadd.s32 %s99, 1
      %p103 = scmp.eq.s32.totalorder %s23, 1
      %p104 = scmp.ne.s32.totalorder %s99, %s101
      %p105 = scmp.eq.s32.totalorder %s23, 0
      %p106 = por %p104, %p105
      %p107 = scmp.ne.s32.totalorder %s99, %s101
      %p108 = scmp.eq.s32.totalorder %s28, 1
      %p109 = por %p107, %p108
      %p110 = scmp.ne.s32.totalorder %s101, %s102
      %p111 = scmp.eq.s32.totalorder %s28, 0
      %p112 = por %p110, %p111
      %p113 = scmp.ne.s32.totalorder %s101, %s102
      %p114 = scmp.eq.s32.totalorder %s29, 1
      %p115 = por %p113, %p114
      %p117 = scmp.ne.s32.totalorder %s102, %s116
      %p118 = scmp.eq.s32.totalorder %s29, 0
      %p119 = por %p117, %p118
      %s121 = sadd.s32 %s120, 1
      %p124 = scmp.eq.s32.totalorder %s23, 1
      %p125 = scmp.ne.s32.totalorder %s120, %s122
      %p126 = scmp.eq.s32.totalorder %s23, 0
      %p127 = por %p125, %p126
      %p128 = scmp.ne.s32.totalorder %s120, %s122
      %p129 = scmp.eq.s32.totalorder %s28, 1
      %p130 = por %p128, %p129
      %p131 = scmp.ne.s32.totalorder %s122, %s123
      %p132 = scmp.eq.s32.totalorder %s28, 0
      %p133 = por %p131, %p132
      %p134 = scmp.ne.s32.totalorder %s122, %s123
      %p135 = scmp.eq.s32.totalorder %s29, 1
      %p136 = por %p134, %p135
      %p138 = scmp.ne.s32.totalorder %s123, %s137
      %p139 = scmp.eq.s32.totalorder %s29, 0
      %p140 = por %p138, %p139
      %s142 = sadd.s32 %s141, 1
      %p145 = scmp.eq.s32.totalorder %s23, 1
      %p146 = scmp.ne.s32.totalorder %s141, %s143
      %p147 = scmp.eq.s32.totalorder %s23, 0
      %p148 = por %p146, %p147
      %p149 = scmp.ne.s32.totalorder %s141, %s143
      %p150 = scmp.eq.s32.totalorder %s28, 1
      %p151 = por %p149, %p150
      %p152 = scmp.ne.s32.totalorder %s143, %s144
      %p153 = scmp.eq.s32.totalorder %s28, 0
      %p154 = por %p152, %p153
      %p155 = scmp.ne.s32.totalorder %s143, %s144
      %p156 = scmp.eq.s32.totalorder %s29, 1
      %p157 = por %p155, %p156
      %p159 = scmp.ne.s32.totalorder %s144, %s158
      %p160 = scmp.eq.s32.totalorder %s29, 0
      %p161 = por %p159, %p160
      %s163 = sadd.s32 %s162, 1
      %p166 = scmp.eq.s32.totalorder %s23, 1
      %p167 = scmp.ne.s32.totalorder %s162, %s164
      %p168 = scmp.eq.s32.totalorder %s23, 0
      %p169 = por %p167, %p168
      %p170 = scmp.ne.s32.totalorder %s162, %s164
      %p171 = scmp.eq.s32.totalorder %s28, 1
      %p172 = por %p170, %p171
      %p173 = scmp.ne.s32.totalorder %s164, %s165
      %p174 = scmp.eq.s32.totalorder %s28, 0
      %p175 = por %p173, %p174
      %p176 = scmp.ne.s32.totalorder %s164, %s165
      %p177 = scmp.eq.s32.totalorder %s29, 1
      %p178 = por %p176, %p177
      %p180 = scmp.ne.s32.totalorder %s165, %s179
      %p181 = scmp.eq.s32.totalorder %s29, 0
      %p182 = por %p180, %p181
      %s184 = sadd.s32 %s183, 1
      %p187 = scmp.eq.s32.totalorder %s23, 1
      %p188 = scmp.ne.s32.totalorder %s183, %s185
      %p189 = scmp.eq.s32.totalorder %s23, 0
      %p190 = por %p188, %p189
      %p191 = scmp.ne.s32.totalorder %s183, %s185
      %p192 = scmp.eq.s32.totalorder %s28, 1
      %p193 = por %p191, %p192
      %p194 = scmp.ne.s32.totalorder %s185, %s186
      %p195 = scmp.eq.s32.totalorder %s28, 0
      %p196 = por %p194, %p195
      %p197 = scmp.ne.s32.totalorder %s185, %s186
      %p198 = scmp.eq.s32.totalorder %s29, 1
      %p199 = por %p197, %p198
      %p201 = scmp.ne.s32.totalorder %s186, %s200
      %p202 = scmp.eq.s32.totalorder %s29, 0
      %p203 = por %p201, %p202
      %s205 = sadd.s32 %s204, 1
      %p208 = scmp.eq.s32.totalorder %s23, 1
      %p209 = scmp.ne.s32.totalorder %s204, %s206
      %p210 = scmp.eq.s32.totalorder %s23, 0
      %p211 = por %p209, %p210
      %p212 = scmp.ne.s32.totalorder %s204, %s206
      %p213 = scmp.eq.s32.totalorder %s28, 1
      %p214 = por %p212, %p213
      %p215 = scmp.ne.s32.totalorder %s206, %s207
      %p216 = scmp.eq.s32.totalorder %s28, 0
      %p217 = por %p215, %p216
      %p218 = scmp.ne.s32.totalorder %s206, %s207
      %p219 = scmp.eq.s32.totalorder %s29, 1
      %p220 = por %p218, %p219
      %p222 = scmp.ne.s32.totalorder %s207, %s221
      %p223 = scmp.eq.s32.totalorder %s29, 0
      %p224 = por %p222, %p223
      %s225 = ssub.s32 %s23, %s30
      %p226 = scmp.eq.s32.totalorder %s225, 0
      %s228 = sadd.s32 %s227, 1
      %s229 = scalar_select %p226, %s227, %s228
      %p232 = pneg %p226
      %p233 = scmp.eq.s32.totalorder %s23, 1
      %p234 = por %p232, %p233
      %p235 = scmp.ne.s32.totalorder %s227, %s230
      %p236 = scmp.eq.s32.totalorder %s23, 0
      %p237 = por %p235, %p236
      %p238 = scmp.ne.s32.totalorder %s227, %s230
      %p239 = scmp.eq.s32.totalorder %s28, 1
      %p240 = por %p238, %p239
      %p241 = scmp.ne.s32.totalorder %s230, %s231
      %p242 = scmp.eq.s32.totalorder %s28, 0
      %p243 = por %p241, %p242
      %p244 = scmp.ne.s32.totalorder %s230, %s231
      %p245 = scmp.eq.s32.totalorder %s29, 1
      %p246 = por %p244, %p245
      %p248 = scmp.ne.s32.totalorder %s231, %s247
      %p249 = scmp.eq.s32.totalorder %s29, 0
      %p250 = por %p248, %p249
      %p251 = scmp.le.s32.totalorder 1, %s23
      %p252 = scmp.lt.s32.totalorder %s23, 3
      %p253 = pnand %p251, %p252
      %p254 = pneg %p253
      // Predicated region
      $region9: #{tpu_custom_call.1} parent=5 // pred_check
        _
      $region10: #{tpu_custom_call.1} parent=5 // pred_check_branch
        %256 = sbr.rel (%p253) target = $region12
      $region11: #{tpu_custom_call.1} parent=5 // pred_region
        %s257 = ssub.s32 %s23, 1
        // Predicated region
        $region13: #{tpu_custom_call.1} parent=11 // pred_check
          %p258 = pneg %p70
        $region14: #{tpu_custom_call.1} parent=11 // pred_check_branch
          %260 = sbr.rel (%p258) target = $region16
        $region15: #{tpu_custom_call.1} parent=11 // pred_region
          %s262 = ssub.s32 1024, 1024
          %263 = vsyncadd [#allocation6], %s262
          %s264 = sshll.u32 [#allocation5], 4
          %s265 = int_to_ptr.vmem [resolvable:$true] %s264
          %270 = dma.hbm_to_vmem [thread:$0]  %s1, 1024, %s265, [#allocation6], 64, 64, 4
        $region16: #{tpu_custom_call.1} parent=11 // pred_fallthru
          _
        // Predicated region
        $region17: #{tpu_custom_call.1} parent=11 // pred_check
          %p271 = pneg %p91
        $region18: #{tpu_custom_call.1} parent=11 // pred_check_branch
          %273 = sbr.rel (%p271) target = $region20
        $region19: #{tpu_custom_call.1} parent=11 // pred_region
          _
        $region20: #{tpu_custom_call.1} parent=11 // pred_fallthru
          _
        // Predicated region
        $region21: #{tpu_custom_call.1} parent=11 // pred_check
          %p274 = pneg %p112
        $region22: #{tpu_custom_call.1} parent=11 // pred_check_branch
          %276 = sbr.rel (%p274) target = $region24
        $region23: #{tpu_custom_call.1} parent=11 // pred_region
          _
        $region24: #{tpu_custom_call.1} parent=11 // pred_fallthru
          _
        // Predicated region
        $region25: #{tpu_custom_call.1} parent=11 // pred_check
          %p277 = pneg %p133
        $region26: #{tpu_custom_call.1} parent=11 // pred_check_branch
          %279 = sbr.rel (%p277) target = $region28
        $region27: #{tpu_custom_call.1} parent=11 // pred_region
          _
        $region28: #{tpu_custom_call.1} parent=11 // pred_fallthru
          _
        // Predicated region
        $region29: #{tpu_custom_call.1} parent=11 // pred_check
          %p280 = pneg %p154
        $region30: #{tpu_custom_call.1} parent=11 // pred_check_branch
          %282 = sbr.rel (%p280) target = $region32
        $region31: #{tpu_custom_call.1} parent=11 // pred_region
          %s284 = ssub.s32 1024, 1024
          %285 = vsyncadd [#allocation6], %s284
          %s286 = sshll.u32 [#allocation7], 4
          %s287 = int_to_ptr.vmem [resolvable:$true] %s286
          %292 = dma.hbm_to_vmem [thread:$0]  %s5, 1024, %s287, [#allocation6], 64, 64, 4
        $region32: #{tpu_custom_call.1} parent=11 // pred_fallthru
          _
        // Predicated region
        $region33: #{tpu_custom_call.1} parent=11 // pred_check
          %p293 = pneg %p175
        $region34: #{tpu_custom_call.1} parent=11 // pred_check_branch
          %295 = sbr.rel (%p293) target = $region36
        $region35: #{tpu_custom_call.1} parent=11 // pred_region
          _
        $region36: #{tpu_custom_call.1} parent=11 // pred_fallthru
          _
        // Predicated region
        $region37: #{tpu_custom_call.1} parent=11 // pred_check
          %p296 = pneg %p196
        $region38: #{tpu_custom_call.1} parent=11 // pred_check_branch
          %298 = sbr.rel (%p296) target = $region40
        $region39: #{tpu_custom_call.1} parent=11 // pred_region
          %s300 = ssub.s32 1024, 1024
          %301 = vsyncadd [#allocation9], %s300
          %s302 = sshll.u32 [#allocation8], 4
          %s303 = int_to_ptr.vmem [resolvable:$true] %s302
          %308 = dma.hbm_to_vmem [thread:$0]  %s7, 1024, %s303, [#allocation9], 64, 64, 4
        $region40: #{tpu_custom_call.1} parent=11 // pred_fallthru
          _
        // Predicated region
        $region41: #{tpu_custom_call.1} parent=11 // pred_check
          %p309 = pneg %p217
        $region42: #{tpu_custom_call.1} parent=11 // pred_check_branch
          %311 = sbr.rel (%p309) target = $region44
        $region43: #{tpu_custom_call.1} parent=11 // pred_region
          _
        $region44: #{tpu_custom_call.1} parent=11 // pred_fallthru
          _
      $region12: #{tpu_custom_call.1} parent=5 // pred_fallthru
        _
      %p312 = scmp.lt.s32.totalorder %s23, 2
      // Predicated region
      $region45: #{tpu_custom_call.1} parent=5 // pred_check
        %p313 = pneg %p312
      $region46: #{tpu_custom_call.1} parent=5 // pred_check_branch
        %315 = sbr.rel (%p313) target = $region48
      $region47: #{tpu_custom_call.1} parent=5 // pred_region
        // Predicated region
        $region49: #{tpu_custom_call.1} parent=47 // pred_check
          %p316 = pneg %p43
        $region50: #{tpu_custom_call.1} parent=47 // pred_check_branch
          %318 = sbr.rel (%p316) target = $region52
        $region51: #{tpu_custom_call.1} parent=47 // pred_region
          %s319 = sand.u32 %s33, 1
          %s320 = scalar_lea.sflag [#allocation3], %s319
          %s321 = sand.u32 %s33, 1
          %s322 = smul.addr %s321, 256
          %s323 = scalar_lea.vmem [#allocation2], %s322
          %s324 = smul.u32 32, %s23
          %s326 = ssub.s32 4096, 4096
          %327 = vsyncadd %s320, %s326
          %s328 = smul.addr %s324, 128
          %s329 = scalar_lea.hbm %s0, %s328
          %s330 = sshll.u32 %s323, 4
          %s331 = int_to_ptr.vmem [resolvable:$true] %s330
          %336 = dma.hbm_to_vmem [thread:$0]  %s329, 4096, %s331, %s320, 128, 128, 8
        $region52: #{tpu_custom_call.1} parent=47 // pred_fallthru
          _
      $region48: #{tpu_custom_call.1} parent=5 // pred_fallthru
        _
      %p337 = scmp.le.s32.totalorder 1, %s23
      %p338 = scmp.lt.s32.totalorder %s23, 3
      %p339 = pnand %p337, %p338
      %p340 = pneg %p339
      // Predicated region
      $region53: #{tpu_custom_call.1} parent=5 // pred_check
        _
      $region54: #{tpu_custom_call.1} parent=5 // pred_check_branch
        %342 = sbr.rel (%p339) target = $region56
      $region55: #{tpu_custom_call.1} parent=5 // pred_region
        %s343 = ssub.s32 %s23, 1
        %s344 = sand.u32 %s36, 1
        %s345 = scalar_lea.sflag [#allocation3], %s344
        %s346 = sand.u32 %s36, 1
        %s347 = smul.addr %s346, 256
        %s348 = scalar_lea.vmem [#allocation2], %s347
        // Predicated region
        $region57: #{tpu_custom_call.1} parent=55 // pred_check
          %p349 = pneg %p49
        $region58: #{tpu_custom_call.1} parent=55 // pred_check_branch
          %351 = sbr.rel (%p349) target = $region60
        $region59: #{tpu_custom_call.1} parent=55 // pred_region
          %352 = dma.done %s345, 4096
        $region60: #{tpu_custom_call.1} parent=55 // pred_fallthru
          _
        // Predicated region
        $region61: #{tpu_custom_call.1} parent=55 // pred_check
          %p353 = pneg %p70
        $region62: #{tpu_custom_call.1} parent=55 // pred_check_branch
          %355 = sbr.rel (%p353) target = $region64
        $region63: #{tpu_custom_call.1} parent=55 // pred_region
          %356 = dma.done [#allocation6], 1024
        $region64: #{tpu_custom_call.1} parent=55 // pred_fallthru
          _
        // Predicated region
        $region65: #{tpu_custom_call.1} parent=55 // pred_check
          %p357 = pneg %p154
        $region66: #{tpu_custom_call.1} parent=55 // pred_check_branch
          %359 = sbr.rel (%p357) target = $region68
        $region67: #{tpu_custom_call.1} parent=55 // pred_region
          %360 = dma.done [#allocation6], 1024
        $region68: #{tpu_custom_call.1} parent=55 // pred_fallthru
          _
        // Predicated region
        $region69: #{tpu_custom_call.1} parent=55 // pred_check
          %p361 = pneg %p196
        $region70: #{tpu_custom_call.1} parent=55 // pred_check_branch
          %363 = sbr.rel (%p361) target = $region72
        $region71: #{tpu_custom_call.1} parent=55 // pred_region
          %364 = dma.done [#allocation9], 1024
        $region72: #{tpu_custom_call.1} parent=55 // pred_fallthru
          _
        %s365 = sand.u32 %s36, 1
        %s366 = scalar_lea.sflag [#allocation3], %s365
        %s367 = sand.u32 %s36, 1
        %s368 = smul.addr %s367, 256
        %s369 = scalar_lea.vmem [#allocation2], %s368
        %p370 = pneg %p49
        %p371 = pneg %p46
        %p372 = pneg %p70
        %p373 = pneg %p67
        %p374 = pneg %p91
        %p375 = pneg %p88
        %p376 = pneg %p112
        %p377 = pneg %p109
        %p378 = pneg %p133
        %p379 = pneg %p130
        %p380 = pneg %p154
        %p381 = pneg %p151
        %p382 = pneg %p175
        %p383 = pneg %p172
        %p384 = pneg %p196
        %p385 = pneg %p193
        %p386 = pneg %p217
        %p387 = pneg %p214
        %p388 = pneg %p243
        %p389 = pneg %p240
        %s390 = sand.u32 %s230, 1
        %s391 = scalar_lea.sflag [#allocation4], %s390
        %s392 = sand.u32 %s230, 1
        %s393 = smul.addr %s392, 256
        %s394 = scalar_lea.vmem [#allocation10], %s393
        %s395 = smul.u32 32, %s28
        %s396 = smul.u32 32, %s28
        %v398 = vld [vmem:[%s348] sm:$0xff]
        %v399 = vld [vmem:[%s348 + $0x8] sm:$0xff]
        %v400 = vld [vmem:[%s348 + $0x10] sm:$0xff]
        %v401 = vld [vmem:[%s348 + $0x18] sm:$0xff]
        %v402 = vld [vmem:[%s348 + $0x20] sm:$0xff]
        %v403 = vld [vmem:[%s348 + $0x28] sm:$0xff]
        %v404 = vld [vmem:[%s348 + $0x30] sm:$0xff]
        %v405 = vld [vmem:[%s348 + $0x38] sm:$0xff]
        %v406 = vld [vmem:[%s348 + $0x40] sm:$0xff]
        %v407 = vld [vmem:[%s348 + $0x48] sm:$0xff]
        %v408 = vld [vmem:[%s348 + $0x50] sm:$0xff]
        %v409 = vld [vmem:[%s348 + $0x58] sm:$0xff]
        %v410 = vld [vmem:[%s348 + $0x60] sm:$0xff]
        %v411 = vld [vmem:[%s348 + $0x68] sm:$0xff]
        %v412 = vld [vmem:[%s348 + $0x70] sm:$0xff]
        %v413 = vld [vmem:[%s348 + $0x78] sm:$0xff]
        %v414 = vld [vmem:[%s348 + $0x80] sm:$0xff]
        %v415 = vld [vmem:[%s348 + $0x88] sm:$0xff]
        %v416 = vld [vmem:[%s348 + $0x90] sm:$0xff]
        %v417 = vld [vmem:[%s348 + $0x98] sm:$0xff]
        %v418 = vld [vmem:[%s348 + $0xa0] sm:$0xff]
        %v419 = vld [vmem:[%s348 + $0xa8] sm:$0xff]
        %v420 = vld [vmem:[%s348 + $0xb0] sm:$0xff]
        %v421 = vld [vmem:[%s348 + $0xb8] sm:$0xff]
        %v422 = vld [vmem:[%s348 + $0xc0] sm:$0xff]
        %v423 = vld [vmem:[%s348 + $0xc8] sm:$0xff]
        %v424 = vld [vmem:[%s348 + $0xd0] sm:$0xff]
        %v425 = vld [vmem:[%s348 + $0xd8] sm:$0xff]
        %v426 = vld [vmem:[%s348 + $0xe0] sm:$0xff]
        %v427 = vld [vmem:[%s348 + $0xe8] sm:$0xff]
        %v428 = vld [vmem:[%s348 + $0xf0] sm:$0xff]
        %v429 = vld [vmem:[%s348 + $0xf8] sm:$0xff]
        %v430 = vpack.c.bf16 %v399, %v398
        %v431 = vpack.c.bf16 %v401, %v400
        %v432 = vpack.c.bf16 %v403, %v402
        %v433 = vpack.c.bf16 %v405, %v404
        %v434 = vpack.c.bf16 %v407, %v406
        %v435 = vpack.c.bf16 %v409, %v408
        %v436 = vpack.c.bf16 %v411, %v410
        %v437 = vpack.c.bf16 %v413, %v412
        %v438 = vpack.c.bf16 %v415, %v414
        %v439 = vpack.c.bf16 %v417, %v416
        %v440 = vpack.c.bf16 %v419, %v418
        %v441 = vpack.c.bf16 %v421, %v420
        %v442 = vpack.c.bf16 %v423, %v422
        %v443 = vpack.c.bf16 %v425, %v424
        %v444 = vpack.c.bf16 %v427, %v426
        %v445 = vpack.c.bf16 %v429, %v428
        %v446 = vld [vmem:[#allocation5] sm:$0xf]
        %v447 = vld [vmem:[#allocation5 + $0x4] sm:$0xf]
        %v448 = vld [vmem:[#allocation5 + $0x8] sm:$0xf]
        %v449 = vld [vmem:[#allocation5 + $0xc] sm:$0xf]
        %v450 = vld [vmem:[#allocation5 + $0x10] sm:$0xf]
        %v451 = vld [vmem:[#allocation5 + $0x14] sm:$0xf]
        %v452 = vld [vmem:[#allocation5 + $0x18] sm:$0xf]
        %v453 = vld [vmem:[#allocation5 + $0x1c] sm:$0xf]
        %v454 = vld [vmem:[#allocation5 + $0x20] sm:$0xf]
        %v455 = vld [vmem:[#allocation5 + $0x24] sm:$0xf]
        %v456 = vld [vmem:[#allocation5 + $0x28] sm:$0xf]
        %v457 = vld [vmem:[#allocation5 + $0x2c] sm:$0xf]
        %v458 = vld [vmem:[#allocation5 + $0x30] sm:$0xf]
        %v459 = vld [vmem:[#allocation5 + $0x34] sm:$0xf]
        %v460 = vld [vmem:[#allocation5 + $0x38] sm:$0xf]
        %v461 = vld [vmem:[#allocation5 + $0x3c] sm:$0xf]
        %v462 = vld [vmem:[%s2] sm:$0x1]
        %v464 = vlaneseq
        %v465 = vshrl.u32 %v464, 7
        %v466 = vsub.s32 0, %v465
        %v467 = vrot.slane %v462, %v466
        %v485 = vunpack.c.l.b16 %v446
        %v486 = vunpack.c.l.b16 %v447
        %v487 = vunpack.c.l.b16 %v448
        %v488 = vunpack.c.l.b16 %v449
        %v489 = vunpack.c.l.b16 %v450
        %v490 = vunpack.c.l.b16 %v451
        %v491 = vunpack.c.l.b16 %v452
        %v492 = vunpack.c.l.b16 %v453
        %v493 = vunpack.c.l.b16 %v454
        %v494 = vunpack.c.l.b16 %v455
        %v495 = vunpack.c.l.b16 %v456
        %v496 = vunpack.c.l.b16 %v457
        %v497 = vunpack.c.l.b16 %v458
        %v498 = vunpack.c.l.b16 %v459
        %v499 = vunpack.c.l.b16 %v460
        %v500 = vunpack.c.l.b16 %v461
        %v501 = vpack.c.b16 %v486, %v485
        %v502 = vpack.c.b16 %v488, %v487
        %v503 = vpack.c.b16 %v490, %v489
        %v504 = vpack.c.b16 %v492, %v491
        %v505 = vpack.c.b16 %v494, %v493
        %v506 = vpack.c.b16 %v496, %v495
        %v507 = vpack.c.b16 %v498, %v497
        %v508 = vpack.c.b16 %v500, %v499
        %517 = vmatprep.subr.bf16.mxu0 0
        %518 = vmatpush1.bf16.msra.mxu0 %v508
        %519 = vmatprep.subr.bf16.mxu0 0
        %520 = vmatpush1.bf16.msra.mxu0 %v507
        %521 = vmatprep.subr.bf16.mxu0 0
        %522 = vmatpush1.bf16.msra.mxu0 %v506
        %523 = vmatprep.subr.bf16.mxu0 0
        %524 = vmatpush1.bf16.msra.mxu0 %v505
        %525 = vmatprep.subr.bf16.mxu0 0
        %526 = vmatpush1.bf16.msra.mxu0 %v504
        %527 = vmatprep.subr.bf16.mxu0 0
        %528 = vmatpush1.bf16.msra.mxu0 %v503
        %529 = vmatprep.subr.bf16.mxu0 0
        %530 = vmatpush1.bf16.msra.mxu0 %v502
        %531 = vmatprep.subr.bf16.mxu0 0
        %532 = vmatpush1.bf16.msra.mxu0 %v501
        %533 = vmatprep.subr.bf16.mxu0 0
        %534 = vmatpush2.bf16.msra.mxu0 0
        %535 = vmatprep.subr.bf16.mxu0 0
        %536 = vmatpush2.bf16.msra.mxu0 0
        %537 = vmatprep.subr.bf16.mxu0 0
        %538 = vmatpush2.bf16.msra.mxu0 0
        %539 = vmatprep.subr.bf16.mxu0 0
        %540 = vmatpush2.bf16.msra.mxu0 0
        %541 = vmatprep.subr.bf16.mxu0 0
        %542 = vmatpush2.bf16.msra.mxu0 0
        %543 = vmatprep.subr.bf16.mxu0 0
        %544 = vmatpush2.bf16.msra.mxu0 0
        %545 = vmatprep.subr.bf16.mxu0 0
        %546 = vmatpush2.bf16.msra.mxu0 0
        %547 = vmatprep.subr.bf16.mxu0 0
        %548 = vmatpush2.bf16.msra.mxu0 0
        %549 = vmatprep.mubr.bf16.mxu0 0
        %550 = vmatmul.mubr.bf16.gmra.mxu0 %v430
        %v551 = vpop.f32.mrf.mxu0
        %v552 = vadd.f32 %v467, %v551
        %v553 = vpop.f32.mrf.mxu0
        %v554 = vpop.f32.mrf.mxu0
        %v555 = vadd.f32 %v467, %v554
        %v556 = vpop.f32.mrf.mxu0
        %557 = vmatprep.mubr.bf16.mxu0 0
        %558 = vmatmul.mubr.bf16.gmra.mxu0 %v431
        %v559 = vpop.f32.mrf.mxu0
        %v560 = vadd.f32 %v467, %v559
        %v561 = vpop.f32.mrf.mxu0
        %v562 = vpop.f32.mrf.mxu0
        %v563 = vadd.f32 %v467, %v562
        %v564 = vpop.f32.mrf.mxu0
        %565 = vmatprep.mubr.bf16.mxu0 0
        %566 = vmatmul.mubr.bf16.gmra.mxu0 %v432
        %v567 = vpop.f32.mrf.mxu0
        %v568 = vadd.f32 %v467, %v567
        %v569 = vpop.f32.mrf.mxu0
        %v570 = vpop.f32.mrf.mxu0
        %v571 = vadd.f32 %v467, %v570
        %v572 = vpop.f32.mrf.mxu0
        %573 = vmatprep.mubr.bf16.mxu0 0
        %574 = vmatmul.mubr.bf16.gmra.mxu0 %v433
        %v575 = vpop.f32.mrf.mxu0
        %v576 = vadd.f32 %v467, %v575
        %v577 = vpop.f32.mrf.mxu0
        %v578 = vpop.f32.mrf.mxu0
        %v579 = vadd.f32 %v467, %v578
        %v580 = vpop.f32.mrf.mxu0
        %581 = vmatprep.mubr.bf16.mxu0 0
        %582 = vmatmul.mubr.bf16.gmra.mxu0 %v434
        %v583 = vpop.f32.mrf.mxu0
        %v584 = vadd.f32 %v467, %v583
        %v585 = vpop.f32.mrf.mxu0
        %v586 = vpop.f32.mrf.mxu0
        %v587 = vadd.f32 %v467, %v586
        %v588 = vpop.f32.mrf.mxu0
        %589 = vmatprep.mubr.bf16.mxu0 0
        %590 = vmatmul.mubr.bf16.gmra.mxu0 %v435
        %v591 = vpop.f32.mrf.mxu0
        %v592 = vadd.f32 %v467, %v591
        %v593 = vpop.f32.mrf.mxu0
        %v594 = vpop.f32.mrf.mxu0
        %v595 = vadd.f32 %v467, %v594
        %v596 = vpop.f32.mrf.mxu0
        %597 = vmatprep.mubr.bf16.mxu0 0
        %598 = vmatmul.mubr.bf16.gmra.mxu0 %v436
        %v599 = vpop.f32.mrf.mxu0
        %v600 = vadd.f32 %v467, %v599
        %v601 = vpop.f32.mrf.mxu0
        %v602 = vpop.f32.mrf.mxu0
        %v603 = vadd.f32 %v467, %v602
        %v604 = vpop.f32.mrf.mxu0
        %605 = vmatprep.mubr.bf16.mxu0 0
        %606 = vmatmul.mubr.bf16.gmra.mxu0 %v437
        %v607 = vpop.f32.mrf.mxu0
        %v608 = vadd.f32 %v467, %v607
        %v609 = vpop.f32.mrf.mxu0
        %v610 = vpop.f32.mrf.mxu0
        %v611 = vadd.f32 %v467, %v610
        %v612 = vpop.f32.mrf.mxu0
        %613 = vmatprep.mubr.bf16.mxu0 0
        %614 = vmatmul.mubr.bf16.gmra.mxu0 %v438
        %v615 = vpop.f32.mrf.mxu0
        %v616 = vadd.f32 %v467, %v615
        %v617 = vpop.f32.mrf.mxu0
        %v618 = vpop.f32.mrf.mxu0
        %v619 = vadd.f32 %v467, %v618
        %v620 = vpop.f32.mrf.mxu0
        %621 = vmatprep.mubr.bf16.mxu0 0
        %622 = vmatmul.mubr.bf16.gmra.mxu0 %v439
        %v623 = vpop.f32.mrf.mxu0
        %v624 = vadd.f32 %v467, %v623
        %v625 = vpop.f32.mrf.mxu0
        %v626 = vpop.f32.mrf.mxu0
        %v627 = vadd.f32 %v467, %v626
        %v628 = vpop.f32.mrf.mxu0
        %629 = vmatprep.mubr.bf16.mxu0 0
        %630 = vmatmul.mubr.bf16.gmra.mxu0 %v440
        %v631 = vpop.f32.mrf.mxu0
        %v632 = vadd.f32 %v467, %v631
        %v633 = vpop.f32.mrf.mxu0
        %v634 = vpop.f32.mrf.mxu0
        %v635 = vadd.f32 %v467, %v634
        %v636 = vpop.f32.mrf.mxu0
        %637 = vmatprep.mubr.bf16.mxu0 0
        %638 = vmatmul.mubr.bf16.gmra.mxu0 %v441
        %v639 = vpop.f32.mrf.mxu0
        %v640 = vadd.f32 %v467, %v639
        %v641 = vpop.f32.mrf.mxu0
        %v642 = vpop.f32.mrf.mxu0
        %v643 = vadd.f32 %v467, %v642
        %v644 = vpop.f32.mrf.mxu0
        %645 = vmatprep.mubr.bf16.mxu0 0
        %646 = vmatmul.mubr.bf16.gmra.mxu0 %v442
        %v647 = vpop.f32.mrf.mxu0
        %v648 = vadd.f32 %v467, %v647
        %v649 = vpop.f32.mrf.mxu0
        %v650 = vpop.f32.mrf.mxu0
        %v651 = vadd.f32 %v467, %v650
        %v652 = vpop.f32.mrf.mxu0
        %653 = vmatprep.mubr.bf16.mxu0 0
        %654 = vmatmul.mubr.bf16.gmra.mxu0 %v443
        %v655 = vpop.f32.mrf.mxu0
        %v656 = vadd.f32 %v467, %v655
        %v657 = vpop.f32.mrf.mxu0
        %v658 = vpop.f32.mrf.mxu0
        %v659 = vadd.f32 %v467, %v658
        %v660 = vpop.f32.mrf.mxu0
        %661 = vmatprep.mubr.bf16.mxu0 0
        %662 = vmatmul.mubr.bf16.gmra.mxu0 %v444
        %v663 = vpop.f32.mrf.mxu0
        %v664 = vadd.f32 %v467, %v663
        %v665 = vpop.f32.mrf.mxu0
        %v666 = vpop.f32.mrf.mxu0
        %v667 = vadd.f32 %v467, %v666
        %v668 = vpop.f32.mrf.mxu0
        %669 = vmatprep.mubr.bf16.mxu0 0
        %670 = vmatmul.mubr.bf16.gmra.mxu0 %v445
        %v671 = vpop.f32.mrf.mxu0
        %v672 = vadd.f32 %v467, %v671
        %v673 = vpop.f32.mrf.mxu0
        %v674 = vpop.f32.mrf.mxu0
        %v675 = vadd.f32 %v467, %v674
        %v676 = vpop.f32.mrf.mxu0
        %677 = vdwg.mxu0
        %678 = vadd.xlane.f32.xlu0 %v552
        %v679 = vpop.xlane.xlu0 %678
        %680 = vadd.xlane.f32.xlu0 %v555
        %v681 = vpop.xlane.xlu0 %680
        %682 = vadd.xlane.f32.xlu0 %v560
        %v683 = vpop.xlane.xlu0 %682
        %684 = vadd.xlane.f32.xlu0 %v563
        %v685 = vpop.xlane.xlu0 %684
        %686 = vadd.xlane.f32.xlu0 %v568
        %v687 = vpop.xlane.xlu0 %686
        %688 = vadd.xlane.f32.xlu0 %v571
        %v689 = vpop.xlane.xlu0 %688
        %690 = vadd.xlane.f32.xlu0 %v576
        %v691 = vpop.xlane.xlu0 %690
        %692 = vadd.xlane.f32.xlu0 %v579
        %v693 = vpop.xlane.xlu0 %692
        %694 = vadd.xlane.f32.xlu0 %v584
        %v695 = vpop.xlane.xlu0 %694
        %696 = vadd.xlane.f32.xlu0 %v587
        %v697 = vpop.xlane.xlu0 %696
        %698 = vadd.xlane.f32.xlu0 %v592
        %v699 = vpop.xlane.xlu0 %698
        %700 = vadd.xlane.f32.xlu0 %v595
        %v701 = vpop.xlane.xlu0 %700
        %702 = vadd.xlane.f32.xlu0 %v600
        %v703 = vpop.xlane.xlu0 %702
        %704 = vadd.xlane.f32.xlu0 %v603
        %v705 = vpop.xlane.xlu0 %704
        %706 = vadd.xlane.f32.xlu0 %v608
        %v707 = vpop.xlane.xlu0 %706
        %708 = vadd.xlane.f32.xlu0 %v611
        %v709 = vpop.xlane.xlu0 %708
        %710 = vadd.xlane.f32.xlu0 %v616
        %v711 = vpop.xlane.xlu0 %710
        %712 = vadd.xlane.f32.xlu0 %v619
        %v713 = vpop.xlane.xlu0 %712
        %714 = vadd.xlane.f32.xlu0 %v624
        %v715 = vpop.xlane.xlu0 %714
        %716 = vadd.xlane.f32.xlu0 %v627
        %v717 = vpop.xlane.xlu0 %716
        %718 = vadd.xlane.f32.xlu0 %v632
        %v719 = vpop.xlane.xlu0 %718
        %720 = vadd.xlane.f32.xlu0 %v635
        %v721 = vpop.xlane.xlu0 %720
        %722 = vadd.xlane.f32.xlu0 %v640
        %v723 = vpop.xlane.xlu0 %722
        %724 = vadd.xlane.f32.xlu0 %v643
        %v725 = vpop.xlane.xlu0 %724
        %726 = vadd.xlane.f32.xlu0 %v648
        %v727 = vpop.xlane.xlu0 %726
        %728 = vadd.xlane.f32.xlu0 %v651
        %v729 = vpop.xlane.xlu0 %728
        %730 = vadd.xlane.f32.xlu0 %v656
        %v731 = vpop.xlane.xlu0 %730
        %732 = vadd.xlane.f32.xlu0 %v659
        %v733 = vpop.xlane.xlu0 %732
        %734 = vadd.xlane.f32.xlu0 %v664
        %v735 = vpop.xlane.xlu0 %734
        %736 = vadd.xlane.f32.xlu0 %v667
        %v737 = vpop.xlane.xlu0 %736
        %738 = vadd.xlane.f32.xlu0 %v672
        %v739 = vpop.xlane.xlu0 %738
        %740 = vadd.xlane.f32.xlu0 %v675
        %v741 = vpop.xlane.xlu0 %740
        %v742 = vmul.f32 %v679, 0.0078125
        %v743 = vmul.f32 %v681, 0.0078125
        %v744 = vmul.f32 %v683, 0.0078125
        %v745 = vmul.f32 %v685, 0.0078125
        %v746 = vmul.f32 %v687, 0.0078125
        %v747 = vmul.f32 %v689, 0.0078125
        %v748 = vmul.f32 %v691, 0.0078125
        %v749 = vmul.f32 %v693, 0.0078125
        %v750 = vmul.f32 %v695, 0.0078125
        %v751 = vmul.f32 %v697, 0.0078125
        %v752 = vmul.f32 %v699, 0.0078125
        %v753 = vmul.f32 %v701, 0.0078125
        %v754 = vmul.f32 %v703, 0.0078125
        %v755 = vmul.f32 %v705, 0.0078125
        %v756 = vmul.f32 %v707, 0.0078125
        %v757 = vmul.f32 %v709, 0.0078125
        %v758 = vmul.f32 %v711, 0.0078125
        %v759 = vmul.f32 %v713, 0.0078125
        %v760 = vmul.f32 %v715, 0.0078125
        %v761 = vmul.f32 %v717, 0.0078125
        %v762 = vmul.f32 %v719, 0.0078125
        %v763 = vmul.f32 %v721, 0.0078125
        %v764 = vmul.f32 %v723, 0.0078125
        %v765 = vmul.f32 %v725, 0.0078125
        %v766 = vmul.f32 %v727, 0.0078125
        %v767 = vmul.f32 %v729, 0.0078125
        %v768 = vmul.f32 %v731, 0.0078125
        %v769 = vmul.f32 %v733, 0.0078125
        %v770 = vmul.f32 %v735, 0.0078125
        %v771 = vmul.f32 %v737, 0.0078125
        %v772 = vmul.f32 %v739, 0.0078125
        %v773 = vmul.f32 %v741, 0.0078125
        %v774 = vsub.f32 %v552, %v742
        %v775 = vsub.f32 %v555, %v743
        %v776 = vsub.f32 %v560, %v744
        %v777 = vsub.f32 %v563, %v745
        %v778 = vsub.f32 %v568, %v746
        %v779 = vsub.f32 %v571, %v747
        %v780 = vsub.f32 %v576, %v748
        %v781 = vsub.f32 %v579, %v749
        %v782 = vsub.f32 %v584, %v750
        %v783 = vsub.f32 %v587, %v751
        %v784 = vsub.f32 %v592, %v752
        %v785 = vsub.f32 %v595, %v753
        %v786 = vsub.f32 %v600, %v754
        %v787 = vsub.f32 %v603, %v755
        %v788 = vsub.f32 %v608, %v756
        %v789 = vsub.f32 %v611, %v757
        %v790 = vsub.f32 %v616, %v758
        %v791 = vsub.f32 %v619, %v759
        %v792 = vsub.f32 %v624, %v760
        %v793 = vsub.f32 %v627, %v761
        %v794 = vsub.f32 %v632, %v762
        %v795 = vsub.f32 %v635, %v763
        %v796 = vsub.f32 %v640, %v764
        %v797 = vsub.f32 %v643, %v765
        %v798 = vsub.f32 %v648, %v766
        %v799 = vsub.f32 %v651, %v767
        %v800 = vsub.f32 %v656, %v768
        %v801 = vsub.f32 %v659, %v769
        %v802 = vsub.f32 %v664, %v770
        %v803 = vsub.f32 %v667, %v771
        %v804 = vsub.f32 %v672, %v772
        %v805 = vsub.f32 %v675, %v773
        %v806 = vmul.f32 %v774, %v774
        %v807 = vmul.f32 %v775, %v775
        %v808 = vmul.f32 %v776, %v776
        %v809 = vmul.f32 %v777, %v777
        %v810 = vmul.f32 %v778, %v778
        %v811 = vmul.f32 %v779, %v779
        %v812 = vmul.f32 %v780, %v780
        %v813 = vmul.f32 %v781, %v781
        %v814 = vmul.f32 %v782, %v782
        %v815 = vmul.f32 %v783, %v783
        %v816 = vmul.f32 %v784, %v784
        %v817 = vmul.f32 %v785, %v785
        %v818 = vmul.f32 %v786, %v786
        %v819 = vmul.f32 %v787, %v787
        %v820 = vmul.f32 %v788, %v788
        %v821 = vmul.f32 %v789, %v789
        %v822 = vmul.f32 %v790, %v790
        %v823 = vmul.f32 %v791, %v791
        %v824 = vmul.f32 %v792, %v792
        %v825 = vmul.f32 %v793, %v793
        %v826 = vmul.f32 %v794, %v794
        %v827 = vmul.f32 %v795, %v795
        %v828 = vmul.f32 %v796, %v796
        %v829 = vmul.f32 %v797, %v797
        %v830 = vmul.f32 %v798, %v798
        %v831 = vmul.f32 %v799, %v799
        %v832 = vmul.f32 %v800, %v800
        %v833 = vmul.f32 %v801, %v801
        %v834 = vmul.f32 %v802, %v802
        %v835 = vmul.f32 %v803, %v803
        %v836 = vmul.f32 %v804, %v804
        %v837 = vmul.f32 %v805, %v805
        %838 = vadd.xlane.f32.xlu0 %v806
        %v839 = vpop.xlane.xlu0 %838
        %840 = vadd.xlane.f32.xlu0 %v807
        %v841 = vpop.xlane.xlu0 %840
        %842 = vadd.xlane.f32.xlu0 %v808
        %v843 = vpop.xlane.xlu0 %842
        %844 = vadd.xlane.f32.xlu0 %v809
        %v845 = vpop.xlane.xlu0 %844
        %846 = vadd.xlane.f32.xlu0 %v810
        %v847 = vpop.xlane.xlu0 %846
        %848 = vadd.xlane.f32.xlu0 %v811
        %v849 = vpop.xlane.xlu0 %848
        %850 = vadd.xlane.f32.xlu0 %v812
        %v851 = vpop.xlane.xlu0 %850
        %852 = vadd.xlane.f32.xlu0 %v813
        %v853 = vpop.xlane.xlu0 %852
        %854 = vadd.xlane.f32.xlu0 %v814
        %v855 = vpop.xlane.xlu0 %854
        %856 = vadd.xlane.f32.xlu0 %v815
        %v857 = vpop.xlane.xlu0 %856
        %858 = vadd.xlane.f32.xlu0 %v816
        %v859 = vpop.xlane.xlu0 %858
        %860 = vadd.xlane.f32.xlu0 %v817
        %v861 = vpop.xlane.xlu0 %860
        %862 = vadd.xlane.f32.xlu0 %v818
        %v863 = vpop.xlane.xlu0 %862
        %864 = vadd.xlane.f32.xlu0 %v819
        %v865 = vpop.xlane.xlu0 %864
        %866 = vadd.xlane.f32.xlu0 %v820
        %v867 = vpop.xlane.xlu0 %866
        %868 = vadd.xlane.f32.xlu0 %v821
        %v869 = vpop.xlane.xlu0 %868
        %870 = vadd.xlane.f32.xlu0 %v822
        %v871 = vpop.xlane.xlu0 %870
        %872 = vadd.xlane.f32.xlu0 %v823
        %v873 = vpop.xlane.xlu0 %872
        %874 = vadd.xlane.f32.xlu0 %v824
        %v875 = vpop.xlane.xlu0 %874
        %876 = vadd.xlane.f32.xlu0 %v825
        %v877 = vpop.xlane.xlu0 %876
        %878 = vadd.xlane.f32.xlu0 %v826
        %v879 = vpop.xlane.xlu0 %878
        %880 = vadd.xlane.f32.xlu0 %v827
        %v881 = vpop.xlane.xlu0 %880
        %882 = vadd.xlane.f32.xlu0 %v828
        %v883 = vpop.xlane.xlu0 %882
        %884 = vadd.xlane.f32.xlu0 %v829
        %v885 = vpop.xlane.xlu0 %884
        %886 = vadd.xlane.f32.xlu0 %v830
        %v887 = vpop.xlane.xlu0 %886
        %888 = vadd.xlane.f32.xlu0 %v831
        %v889 = vpop.xlane.xlu0 %888
        %890 = vadd.xlane.f32.xlu0 %v832
        %v891 = vpop.xlane.xlu0 %890
        %892 = vadd.xlane.f32.xlu0 %v833
        %v893 = vpop.xlane.xlu0 %892
        %894 = vadd.xlane.f32.xlu0 %v834
        %v895 = vpop.xlane.xlu0 %894
        %896 = vadd.xlane.f32.xlu0 %v835
        %v897 = vpop.xlane.xlu0 %896
        %898 = vadd.xlane.f32.xlu0 %v836
        %v899 = vpop.xlane.xlu0 %898
        %900 = vadd.xlane.f32.xlu0 %v837
        %v901 = vpop.xlane.xlu0 %900
        %v902 = vmul.f32 %v839, 0.0078125
        %v903 = vmul.f32 %v841, 0.0078125
        %v904 = vmul.f32 %v843, 0.0078125
        %v905 = vmul.f32 %v845, 0.0078125
        %v906 = vmul.f32 %v847, 0.0078125
        %v907 = vmul.f32 %v849, 0.0078125
        %v908 = vmul.f32 %v851, 0.0078125
        %v909 = vmul.f32 %v853, 0.0078125
        %v910 = vmul.f32 %v855, 0.0078125
        %v911 = vmul.f32 %v857, 0.0078125
        %v912 = vmul.f32 %v859, 0.0078125
        %v913 = vmul.f32 %v861, 0.0078125
        %v914 = vmul.f32 %v863, 0.0078125
        %v915 = vmul.f32 %v865, 0.0078125
        %v916 = vmul.f32 %v867, 0.0078125
        %v917 = vmul.f32 %v869, 0.0078125
        %v918 = vmul.f32 %v871, 0.0078125
        %v919 = vmul.f32 %v873, 0.0078125
        %v920 = vmul.f32 %v875, 0.0078125
        %v921 = vmul.f32 %v877, 0.0078125
        %v922 = vmul.f32 %v879, 0.0078125
        %v923 = vmul.f32 %v881, 0.0078125
        %v924 = vmul.f32 %v883, 0.0078125
        %v925 = vmul.f32 %v885, 0.0078125
        %v926 = vmul.f32 %v887, 0.0078125
        %v927 = vmul.f32 %v889, 0.0078125
        %v928 = vmul.f32 %v891, 0.0078125
        %v929 = vmul.f32 %v893, 0.0078125
        %v930 = vmul.f32 %v895, 0.0078125
        %v931 = vmul.f32 %v897, 0.0078125
        %v932 = vmul.f32 %v899, 0.0078125
        %v933 = vmul.f32 %v901, 0.0078125
        %v934 = vadd.f32 %v902, 1e-05
        %v935 = vadd.f32 %v903, 1e-05
        %v936 = vadd.f32 %v904, 1e-05
        %v937 = vadd.f32 %v905, 1e-05
        %v938 = vadd.f32 %v906, 1e-05
        %v939 = vadd.f32 %v907, 1e-05
        %v940 = vadd.f32 %v908, 1e-05
        %v941 = vadd.f32 %v909, 1e-05
        %v942 = vadd.f32 %v910, 1e-05
        %v943 = vadd.f32 %v911, 1e-05
        %v944 = vadd.f32 %v912, 1e-05
        %v945 = vadd.f32 %v913, 1e-05
        %v946 = vadd.f32 %v914, 1e-05
        %v947 = vadd.f32 %v915, 1e-05
        %v948 = vadd.f32 %v916, 1e-05
        %v949 = vadd.f32 %v917, 1e-05
        %v950 = vadd.f32 %v918, 1e-05
        %v951 = vadd.f32 %v919, 1e-05
        %v952 = vadd.f32 %v920, 1e-05
        %v953 = vadd.f32 %v921, 1e-05
        %v954 = vadd.f32 %v922, 1e-05
        %v955 = vadd.f32 %v923, 1e-05
        %v956 = vadd.f32 %v924, 1e-05
        %v957 = vadd.f32 %v925, 1e-05
        %v958 = vadd.f32 %v926, 1e-05
        %v959 = vadd.f32 %v927, 1e-05
        %v960 = vadd.f32 %v928, 1e-05
        %v961 = vadd.f32 %v929, 1e-05
        %v962 = vadd.f32 %v930, 1e-05
        %v963 = vadd.f32 %v931, 1e-05
        %v964 = vadd.f32 %v932, 1e-05
        %v965 = vadd.f32 %v933, 1e-05
        %v966 = vrsqrt.pop %v934
        %v967 = vrsqrt.pop %v935
        %v968 = vrsqrt.pop %v936
        %v969 = vrsqrt.pop %v937
        %v970 = vrsqrt.pop %v938
        %v971 = vrsqrt.pop %v939
        %v972 = vrsqrt.pop %v940
        %v973 = vrsqrt.pop %v941
        %v974 = vrsqrt.pop %v942
        %v975 = vrsqrt.pop %v943
        %v976 = vrsqrt.pop %v944
        %v977 = vrsqrt.pop %v945
        %v978 = vrsqrt.pop %v946
        %v979 = vrsqrt.pop %v947
        %v980 = vrsqrt.pop %v948
        %v981 = vrsqrt.pop %v949
        %v982 = vrsqrt.pop %v950
        %v983 = vrsqrt.pop %v951
        %v984 = vrsqrt.pop %v952
        %v985 = vrsqrt.pop %v953
        %v986 = vrsqrt.pop %v954
        %v987 = vrsqrt.pop %v955
        %v988 = vrsqrt.pop %v956
        %v989 = vrsqrt.pop %v957
        %v990 = vrsqrt.pop %v958
        %v991 = vrsqrt.pop %v959
        %v992 = vrsqrt.pop %v960
        %v993 = vrsqrt.pop %v961
        %v994 = vrsqrt.pop %v962
        %v995 = vrsqrt.pop %v963
        %v996 = vrsqrt.pop %v964
        %v997 = vrsqrt.pop %v965
        %v998 = vld [vmem:[%s3] sm:$0x1]
        %v1000 = vlaneseq
        %v1001 = vshrl.u32 %v1000, 7
        %v1002 = vsub.s32 0, %v1001
        %v1003 = vrot.slane %v998, %v1002
        %v1005 = vmul.f32 %v966, %v1003
        %v1006 = vmul.f32 %v967, %v1003
        %v1007 = vmul.f32 %v968, %v1003
        %v1008 = vmul.f32 %v969, %v1003
        %v1009 = vmul.f32 %v970, %v1003
        %v1010 = vmul.f32 %v971, %v1003
        %v1011 = vmul.f32 %v972, %v1003
        %v1012 = vmul.f32 %v973, %v1003
        %v1013 = vmul.f32 %v974, %v1003
        %v1014 = vmul.f32 %v975, %v1003
        %v1015 = vmul.f32 %v976, %v1003
        %v1016 = vmul.f32 %v977, %v1003
        %v1017 = vmul.f32 %v978, %v1003
        %v1018 = vmul.f32 %v979, %v1003
        %v1019 = vmul.f32 %v980, %v1003
        %v1020 = vmul.f32 %v981, %v1003
        %v1021 = vmul.f32 %v982, %v1003
        %v1022 = vmul.f32 %v983, %v1003
        %v1023 = vmul.f32 %v984, %v1003
        %v1024 = vmul.f32 %v985, %v1003
        %v1025 = vmul.f32 %v986, %v1003
        %v1026 = vmul.f32 %v987, %v1003
        %v1027 = vmul.f32 %v988, %v1003
        %v1028 = vmul.f32 %v989, %v1003
        %v1029 = vmul.f32 %v990, %v1003
        %v1030 = vmul.f32 %v991, %v1003
        %v1031 = vmul.f32 %v992, %v1003
        %v1032 = vmul.f32 %v993, %v1003
        %v1033 = vmul.f32 %v994, %v1003
        %v1034 = vmul.f32 %v995, %v1003
        %v1035 = vmul.f32 %v996, %v1003
        %v1036 = vmul.f32 %v997, %v1003
        %v1037 = vmul.f32 %v774, %v1005
        %v1038 = vmul.f32 %v775, %v1006
        %v1039 = vmul.f32 %v776, %v1007
        %v1040 = vmul.f32 %v777, %v1008
        %v1041 = vmul.f32 %v778, %v1009
        %v1042 = vmul.f32 %v779, %v1010
        %v1043 = vmul.f32 %v780, %v1011
        %v1044 = vmul.f32 %v781, %v1012
        %v1045 = vmul.f32 %v782, %v1013
        %v1046 = vmul.f32 %v783, %v1014
        %v1047 = vmul.f32 %v784, %v1015
        %v1048 = vmul.f32 %v785, %v1016
        %v1049 = vmul.f32 %v786, %v1017
        %v1050 = vmul.f32 %v787, %v1018
        %v1051 = vmul.f32 %v788, %v1019
        %v1052 = vmul.f32 %v789, %v1020
        %v1053 = vmul.f32 %v790, %v1021
        %v1054 = vmul.f32 %v791, %v1022
        %v1055 = vmul.f32 %v792, %v1023
        %v1056 = vmul.f32 %v793, %v1024
        %v1057 = vmul.f32 %v794, %v1025
        %v1058 = vmul.f32 %v795, %v1026
        %v1059 = vmul.f32 %v796, %v1027
        %v1060 = vmul.f32 %v797, %v1028
        %v1061 = vmul.f32 %v798, %v1029
        %v1062 = vmul.f32 %v799, %v1030
        %v1063 = vmul.f32 %v800, %v1031
        %v1064 = vmul.f32 %v801, %v1032
        %v1065 = vmul.f32 %v802, %v1033
        %v1066 = vmul.f32 %v803, %v1034
        %v1067 = vmul.f32 %v804, %v1035
        %v1068 = vmul.f32 %v805, %v1036
        %v1069 = vld [vmem:[%s4] sm:$0x1]
        %v1071 = vlaneseq
        %v1072 = vshrl.u32 %v1071, 7
        %v1073 = vsub.s32 0, %v1072
        %v1074 = vrot.slane %v1069, %v1073
        %v1076 = vadd.f32 %v1037, %v1074
        %v1077 = vadd.f32 %v1038, %v1074
        %v1078 = vadd.f32 %v1039, %v1074
        %v1079 = vadd.f32 %v1040, %v1074
        %v1080 = vadd.f32 %v1041, %v1074
        %v1081 = vadd.f32 %v1042, %v1074
        %v1082 = vadd.f32 %v1043, %v1074
        %v1083 = vadd.f32 %v1044, %v1074
        %v1084 = vadd.f32 %v1045, %v1074
        %v1085 = vadd.f32 %v1046, %v1074
        %v1086 = vadd.f32 %v1047, %v1074
        %v1087 = vadd.f32 %v1048, %v1074
        %v1088 = vadd.f32 %v1049, %v1074
        %v1089 = vadd.f32 %v1050, %v1074
        %v1090 = vadd.f32 %v1051, %v1074
        %v1091 = vadd.f32 %v1052, %v1074
        %v1092 = vadd.f32 %v1053, %v1074
        %v1093 = vadd.f32 %v1054, %v1074
        %v1094 = vadd.f32 %v1055, %v1074
        %v1095 = vadd.f32 %v1056, %v1074
        %v1096 = vadd.f32 %v1057, %v1074
        %v1097 = vadd.f32 %v1058, %v1074
        %v1098 = vadd.f32 %v1059, %v1074
        %v1099 = vadd.f32 %v1060, %v1074
        %v1100 = vadd.f32 %v1061, %v1074
        %v1101 = vadd.f32 %v1062, %v1074
        %v1102 = vadd.f32 %v1063, %v1074
        %v1103 = vadd.f32 %v1064, %v1074
        %v1104 = vadd.f32 %v1065, %v1074
        %v1105 = vadd.f32 %v1066, %v1074
        %v1106 = vadd.f32 %v1067, %v1074
        %v1107 = vadd.f32 %v1068, %v1074
        %v1108 = vtanh.pop %v1076
        %v1109 = vtanh.pop %v1077
        %v1110 = vtanh.pop %v1078
        %v1111 = vtanh.pop %v1079
        %v1112 = vtanh.pop %v1080
        %v1113 = vtanh.pop %v1081
        %v1114 = vtanh.pop %v1082
        %v1115 = vtanh.pop %v1083
        %v1116 = vtanh.pop %v1084
        %v1117 = vtanh.pop %v1085
        %v1118 = vtanh.pop %v1086
        %v1119 = vtanh.pop %v1087
        %v1120 = vtanh.pop %v1088
        %v1121 = vtanh.pop %v1089
        %v1122 = vtanh.pop %v1090
        %v1123 = vtanh.pop %v1091
        %v1124 = vtanh.pop %v1092
        %v1125 = vtanh.pop %v1093
        %v1126 = vtanh.pop %v1094
        %v1127 = vtanh.pop %v1095
        %v1128 = vtanh.pop %v1096
        %v1129 = vtanh.pop %v1097
        %v1130 = vtanh.pop %v1098
        %v1131 = vtanh.pop %v1099
        %v1132 = vtanh.pop %v1100
        %v1133 = vtanh.pop %v1101
        %v1134 = vtanh.pop %v1102
        %v1135 = vtanh.pop %v1103
        %v1136 = vtanh.pop %v1104
        %v1137 = vtanh.pop %v1105
        %v1138 = vtanh.pop %v1106
        %v1139 = vtanh.pop %v1107
        %v1140 = vpack.c.bf16 %v1109, %v1108
        %v1141 = vpack.c.bf16 %v1111, %v1110
        %v1142 = vpack.c.bf16 %v1113, %v1112
        %v1143 = vpack.c.bf16 %v1115, %v1114
        %v1144 = vpack.c.bf16 %v1117, %v1116
        %v1145 = vpack.c.bf16 %v1119, %v1118
        %v1146 = vpack.c.bf16 %v1121, %v1120
        %v1147 = vpack.c.bf16 %v1123, %v1122
        %v1148 = vpack.c.bf16 %v1125, %v1124
        %v1149 = vpack.c.bf16 %v1127, %v1126
        %v1150 = vpack.c.bf16 %v1129, %v1128
        %v1151 = vpack.c.bf16 %v1131, %v1130
        %v1152 = vpack.c.bf16 %v1133, %v1132
        %v1153 = vpack.c.bf16 %v1135, %v1134
        %v1154 = vpack.c.bf16 %v1137, %v1136
        %v1155 = vpack.c.bf16 %v1139, %v1138
        %v1156 = vld [vmem:[#allocation7] sm:$0xf]
        %v1157 = vld [vmem:[#allocation7 + $0x4] sm:$0xf]
        %v1158 = vld [vmem:[#allocation7 + $0x8] sm:$0xf]
        %v1159 = vld [vmem:[#allocation7 + $0xc] sm:$0xf]
        %v1160 = vld [vmem:[#allocation7 + $0x10] sm:$0xf]
        %v1161 = vld [vmem:[#allocation7 + $0x14] sm:$0xf]
        %v1162 = vld [vmem:[#allocation7 + $0x18] sm:$0xf]
        %v1163 = vld [vmem:[#allocation7 + $0x1c] sm:$0xf]
        %v1164 = vld [vmem:[#allocation7 + $0x20] sm:$0xf]
        %v1165 = vld [vmem:[#allocation7 + $0x24] sm:$0xf]
        %v1166 = vld [vmem:[#allocation7 + $0x28] sm:$0xf]
        %v1167 = vld [vmem:[#allocation7 + $0x2c] sm:$0xf]
        %v1168 = vld [vmem:[#allocation7 + $0x30] sm:$0xf]
        %v1169 = vld [vmem:[#allocation7 + $0x34] sm:$0xf]
        %v1170 = vld [vmem:[#allocation7 + $0x38] sm:$0xf]
        %v1171 = vld [vmem:[#allocation7 + $0x3c] sm:$0xf]
        %v1172 = vld [vmem:[%s6] sm:$0x1]
        %v1174 = vlaneseq
        %v1175 = vshrl.u32 %v1174, 7
        %v1176 = vsub.s32 0, %v1175
        %v1177 = vrot.slane %v1172, %v1176
        %v1195 = vunpack.c.l.b16 %v1156
        %v1196 = vunpack.c.l.b16 %v1157
        %v1197 = vunpack.c.l.b16 %v1158
        %v1198 = vunpack.c.l.b16 %v1159
        %v1199 = vunpack.c.l.b16 %v1160
        %v1200 = vunpack.c.l.b16 %v1161
        %v1201 = vunpack.c.l.b16 %v1162
        %v1202 = vunpack.c.l.b16 %v1163
        %v1203 = vunpack.c.l.b16 %v1164
        %v1204 = vunpack.c.l.b16 %v1165
        %v1205 = vunpack.c.l.b16 %v1166
        %v1206 = vunpack.c.l.b16 %v1167
        %v1207 = vunpack.c.l.b16 %v1168
        %v1208 = vunpack.c.l.b16 %v1169
        %v1209 = vunpack.c.l.b16 %v1170
        %v1210 = vunpack.c.l.b16 %v1171
        %v1211 = vpack.c.b16 %v1196, %v1195
        %v1212 = vpack.c.b16 %v1198, %v1197
        %v1213 = vpack.c.b16 %v1200, %v1199
        %v1214 = vpack.c.b16 %v1202, %v1201
        %v1215 = vpack.c.b16 %v1204, %v1203
        %v1216 = vpack.c.b16 %v1206, %v1205
        %v1217 = vpack.c.b16 %v1208, %v1207
        %v1218 = vpack.c.b16 %v1210, %v1209
        %1227 = vmatprep.subr.bf16.mxu0 0
        %1228 = vmatpush1.bf16.msra.mxu0 %v1218
        %1229 = vmatprep.subr.bf16.mxu0 0
        %1230 = vmatpush1.bf16.msra.mxu0 %v1217
        %1231 = vmatprep.subr.bf16.mxu0 0
        %1232 = vmatpush1.bf16.msra.mxu0 %v1216
        %1233 = vmatprep.subr.bf16.mxu0 0
        %1234 = vmatpush1.bf16.msra.mxu0 %v1215
        %1235 = vmatprep.subr.bf16.mxu0 0
        %1236 = vmatpush1.bf16.msra.mxu0 %v1214
        %1237 = vmatprep.subr.bf16.mxu0 0
        %1238 = vmatpush1.bf16.msra.mxu0 %v1213
        %1239 = vmatprep.subr.bf16.mxu0 0
        %1240 = vmatpush1.bf16.msra.mxu0 %v1212
        %1241 = vmatprep.subr.bf16.mxu0 0
        %1242 = vmatpush1.bf16.msra.mxu0 %v1211
        %1243 = vmatprep.subr.bf16.mxu0 0
        %1244 = vmatpush2.bf16.msra.mxu0 0
        %1245 = vmatprep.subr.bf16.mxu0 0
        %1246 = vmatpush2.bf16.msra.mxu0 0
        %1247 = vmatprep.subr.bf16.mxu0 0
        %1248 = vmatpush2.bf16.msra.mxu0 0
        %1249 = vmatprep.subr.bf16.mxu0 0
        %1250 = vmatpush2.bf16.msra.mxu0 0
        %1251 = vmatprep.subr.bf16.mxu0 0
        %1252 = vmatpush2.bf16.msra.mxu0 0
        %1253 = vmatprep.subr.bf16.mxu0 0
        %1254 = vmatpush2.bf16.msra.mxu0 0
        %1255 = vmatprep.subr.bf16.mxu0 0
        %1256 = vmatpush2.bf16.msra.mxu0 0
        %1257 = vmatprep.subr.bf16.mxu0 0
        %1258 = vmatpush2.bf16.msra.mxu0 0
        %1259 = vmatprep.mubr.bf16.mxu0 0
        %1260 = vmatmul.mubr.bf16.gmra.mxu0 %v1140
        %v1261 = vpop.f32.mrf.mxu0
        %v1262 = vadd.f32 %v1177, %v1261
        %v1263 = vpop.f32.mrf.mxu0
        %v1264 = vpop.f32.mrf.mxu0
        %v1265 = vadd.f32 %v1177, %v1264
        %v1266 = vpop.f32.mrf.mxu0
        %1267 = vmatprep.mubr.bf16.mxu0 0
        %1268 = vmatmul.mubr.bf16.gmra.mxu0 %v1141
        %v1269 = vpop.f32.mrf.mxu0
        %v1270 = vadd.f32 %v1177, %v1269
        %v1271 = vpop.f32.mrf.mxu0
        %v1272 = vpop.f32.mrf.mxu0
        %v1273 = vadd.f32 %v1177, %v1272
        %v1274 = vpop.f32.mrf.mxu0
        %1275 = vmatprep.mubr.bf16.mxu0 0
        %1276 = vmatmul.mubr.bf16.gmra.mxu0 %v1142
        %v1277 = vpop.f32.mrf.mxu0
        %v1278 = vadd.f32 %v1177, %v1277
        %v1279 = vpop.f32.mrf.mxu0
        %v1280 = vpop.f32.mrf.mxu0
        %v1281 = vadd.f32 %v1177, %v1280
        %v1282 = vpop.f32.mrf.mxu0
        %1283 = vmatprep.mubr.bf16.mxu0 0
        %1284 = vmatmul.mubr.bf16.gmra.mxu0 %v1143
        %v1285 = vpop.f32.mrf.mxu0
        %v1286 = vadd.f32 %v1177, %v1285
        %v1287 = vpop.f32.mrf.mxu0
        %v1288 = vpop.f32.mrf.mxu0
        %v1289 = vadd.f32 %v1177, %v1288
        %v1290 = vpop.f32.mrf.mxu0
        %1291 = vmatprep.mubr.bf16.mxu0 0
        %1292 = vmatmul.mubr.bf16.gmra.mxu0 %v1144
        %v1293 = vpop.f32.mrf.mxu0
        %v1294 = vadd.f32 %v1177, %v1293
        %v1295 = vpop.f32.mrf.mxu0
        %v1296 = vpop.f32.mrf.mxu0
        %v1297 = vadd.f32 %v1177, %v1296
        %v1298 = vpop.f32.mrf.mxu0
        %1299 = vmatprep.mubr.bf16.mxu0 0
        %1300 = vmatmul.mubr.bf16.gmra.mxu0 %v1145
        %v1301 = vpop.f32.mrf.mxu0
        %v1302 = vadd.f32 %v1177, %v1301
        %v1303 = vpop.f32.mrf.mxu0
        %v1304 = vpop.f32.mrf.mxu0
        %v1305 = vadd.f32 %v1177, %v1304
        %v1306 = vpop.f32.mrf.mxu0
        %1307 = vmatprep.mubr.bf16.mxu0 0
        %1308 = vmatmul.mubr.bf16.gmra.mxu0 %v1146
        %v1309 = vpop.f32.mrf.mxu0
        %v1310 = vadd.f32 %v1177, %v1309
        %v1311 = vpop.f32.mrf.mxu0
        %v1312 = vpop.f32.mrf.mxu0
        %v1313 = vadd.f32 %v1177, %v1312
        %v1314 = vpop.f32.mrf.mxu0
        %1315 = vmatprep.mubr.bf16.mxu0 0
        %1316 = vmatmul.mubr.bf16.gmra.mxu0 %v1147
        %v1317 = vpop.f32.mrf.mxu0
        %v1318 = vadd.f32 %v1177, %v1317
        %v1319 = vpop.f32.mrf.mxu0
        %v1320 = vpop.f32.mrf.mxu0
        %v1321 = vadd.f32 %v1177, %v1320
        %v1322 = vpop.f32.mrf.mxu0
        %1323 = vmatprep.mubr.bf16.mxu0 0
        %1324 = vmatmul.mubr.bf16.gmra.mxu0 %v1148
        %v1325 = vpop.f32.mrf.mxu0
        %v1326 = vadd.f32 %v1177, %v1325
        %v1327 = vpop.f32.mrf.mxu0
        %v1328 = vpop.f32.mrf.mxu0
        %v1329 = vadd.f32 %v1177, %v1328
        %v1330 = vpop.f32.mrf.mxu0
        %1331 = vmatprep.mubr.bf16.mxu0 0
        %1332 = vmatmul.mubr.bf16.gmra.mxu0 %v1149
        %v1333 = vpop.f32.mrf.mxu0
        %v1334 = vadd.f32 %v1177, %v1333
        %v1335 = vpop.f32.mrf.mxu0
        %v1336 = vpop.f32.mrf.mxu0
        %v1337 = vadd.f32 %v1177, %v1336
        %v1338 = vpop.f32.mrf.mxu0
        %1339 = vmatprep.mubr.bf16.mxu0 0
        %1340 = vmatmul.mubr.bf16.gmra.mxu0 %v1150
        %v1341 = vpop.f32.mrf.mxu0
        %v1342 = vadd.f32 %v1177, %v1341
        %v1343 = vpop.f32.mrf.mxu0
        %v1344 = vpop.f32.mrf.mxu0
        %v1345 = vadd.f32 %v1177, %v1344
        %v1346 = vpop.f32.mrf.mxu0
        %1347 = vmatprep.mubr.bf16.mxu0 0
        %1348 = vmatmul.mubr.bf16.gmra.mxu0 %v1151
        %v1349 = vpop.f32.mrf.mxu0
        %v1350 = vadd.f32 %v1177, %v1349
        %v1351 = vpop.f32.mrf.mxu0
        %v1352 = vpop.f32.mrf.mxu0
        %v1353 = vadd.f32 %v1177, %v1352
        %v1354 = vpop.f32.mrf.mxu0
        %1355 = vmatprep.mubr.bf16.mxu0 0
        %1356 = vmatmul.mubr.bf16.gmra.mxu0 %v1152
        %v1357 = vpop.f32.mrf.mxu0
        %v1358 = vadd.f32 %v1177, %v1357
        %v1359 = vpop.f32.mrf.mxu0
        %v1360 = vpop.f32.mrf.mxu0
        %v1361 = vadd.f32 %v1177, %v1360
        %v1362 = vpop.f32.mrf.mxu0
        %1363 = vmatprep.mubr.bf16.mxu0 0
        %1364 = vmatmul.mubr.bf16.gmra.mxu0 %v1153
        %v1365 = vpop.f32.mrf.mxu0
        %v1366 = vadd.f32 %v1177, %v1365
        %v1367 = vpop.f32.mrf.mxu0
        %v1368 = vpop.f32.mrf.mxu0
        %v1369 = vadd.f32 %v1177, %v1368
        %v1370 = vpop.f32.mrf.mxu0
        %1371 = vmatprep.mubr.bf16.mxu0 0
        %1372 = vmatmul.mubr.bf16.gmra.mxu0 %v1154
        %v1373 = vpop.f32.mrf.mxu0
        %v1374 = vadd.f32 %v1177, %v1373
        %v1375 = vpop.f32.mrf.mxu0
        %v1376 = vpop.f32.mrf.mxu0
        %v1377 = vadd.f32 %v1177, %v1376
        %v1378 = vpop.f32.mrf.mxu0
        %1379 = vmatprep.mubr.bf16.mxu0 0
        %1380 = vmatmul.mubr.bf16.gmra.mxu0 %v1155
        %v1381 = vpop.f32.mrf.mxu0
        %v1382 = vadd.f32 %v1177, %v1381
        %v1383 = vpop.f32.mrf.mxu0
        %v1384 = vpop.f32.mrf.mxu0
        %v1385 = vadd.f32 %v1177, %v1384
        %v1386 = vpop.f32.mrf.mxu0
        %1387 = vdwg.mxu0
        %v1388 = vmax.f32 %v1262, 0.0
        %v1389 = vmax.f32 %v1265, 0.0
        %v1390 = vmax.f32 %v1270, 0.0
        %v1391 = vmax.f32 %v1273, 0.0
        %v1392 = vmax.f32 %v1278, 0.0
        %v1393 = vmax.f32 %v1281, 0.0
        %v1394 = vmax.f32 %v1286, 0.0
        %v1395 = vmax.f32 %v1289, 0.0
        %v1396 = vmax.f32 %v1294, 0.0
        %v1397 = vmax.f32 %v1297, 0.0
        %v1398 = vmax.f32 %v1302, 0.0
        %v1399 = vmax.f32 %v1305, 0.0
        %v1400 = vmax.f32 %v1310, 0.0
        %v1401 = vmax.f32 %v1313, 0.0
        %v1402 = vmax.f32 %v1318, 0.0
        %v1403 = vmax.f32 %v1321, 0.0
        %v1404 = vmax.f32 %v1326, 0.0
        %v1405 = vmax.f32 %v1329, 0.0
        %v1406 = vmax.f32 %v1334, 0.0
        %v1407 = vmax.f32 %v1337, 0.0
        %v1408 = vmax.f32 %v1342, 0.0
        %v1409 = vmax.f32 %v1345, 0.0
        %v1410 = vmax.f32 %v1350, 0.0
        %v1411 = vmax.f32 %v1353, 0.0
        %v1412 = vmax.f32 %v1358, 0.0
        %v1413 = vmax.f32 %v1361, 0.0
        %v1414 = vmax.f32 %v1366, 0.0
        %v1415 = vmax.f32 %v1369, 0.0
        %v1416 = vmax.f32 %v1374, 0.0
        %v1417 = vmax.f32 %v1377, 0.0
        %v1418 = vmax.f32 %v1382, 0.0
        %v1419 = vmax.f32 %v1385, 0.0
        %v1420 = vpack.c.bf16 %v1389, %v1388
        %v1421 = vpack.c.bf16 %v1391, %v1390
        %v1422 = vpack.c.bf16 %v1393, %v1392
        %v1423 = vpack.c.bf16 %v1395, %v1394
        %v1424 = vpack.c.bf16 %v1397, %v1396
        %v1425 = vpack.c.bf16 %v1399, %v1398
        %v1426 = vpack.c.bf16 %v1401, %v1400
        %v1427 = vpack.c.bf16 %v1403, %v1402
        %v1428 = vpack.c.bf16 %v1405, %v1404
        %v1429 = vpack.c.bf16 %v1407, %v1406
        %v1430 = vpack.c.bf16 %v1409, %v1408
        %v1431 = vpack.c.bf16 %v1411, %v1410
        %v1432 = vpack.c.bf16 %v1413, %v1412
        %v1433 = vpack.c.bf16 %v1415, %v1414
        %v1434 = vpack.c.bf16 %v1417, %v1416
        %v1435 = vpack.c.bf16 %v1419, %v1418
        %v1436 = vld [vmem:[#allocation8] sm:$0xf]
        %v1437 = vld [vmem:[#allocation8 + $0x4] sm:$0xf]
        %v1438 = vld [vmem:[#allocation8 + $0x8] sm:$0xf]
        %v1439 = vld [vmem:[#allocation8 + $0xc] sm:$0xf]
        %v1440 = vld [vmem:[#allocation8 + $0x10] sm:$0xf]
        %v1441 = vld [vmem:[#allocation8 + $0x14] sm:$0xf]
        %v1442 = vld [vmem:[#allocation8 + $0x18] sm:$0xf]
        %v1443 = vld [vmem:[#allocation8 + $0x1c] sm:$0xf]
        %v1444 = vld [vmem:[#allocation8 + $0x20] sm:$0xf]
        %v1445 = vld [vmem:[#allocation8 + $0x24] sm:$0xf]
        %v1446 = vld [vmem:[#allocation8 + $0x28] sm:$0xf]
        %v1447 = vld [vmem:[#allocation8 + $0x2c] sm:$0xf]
        %v1448 = vld [vmem:[#allocation8 + $0x30] sm:$0xf]
        %v1449 = vld [vmem:[#allocation8 + $0x34] sm:$0xf]
        %v1450 = vld [vmem:[#allocation8 + $0x38] sm:$0xf]
        %v1451 = vld [vmem:[#allocation8 + $0x3c] sm:$0xf]
        %v1452 = vld [vmem:[%s8] sm:$0x1]
        %v1454 = vlaneseq
        %v1455 = vshrl.u32 %v1454, 7
        %v1456 = vsub.s32 0, %v1455
        %v1457 = vrot.slane %v1452, %v1456
        %v1475 = vunpack.c.l.b16 %v1436
        %v1476 = vunpack.c.l.b16 %v1437
        %v1477 = vunpack.c.l.b16 %v1438
        %v1478 = vunpack.c.l.b16 %v1439
        %v1479 = vunpack.c.l.b16 %v1440
        %v1480 = vunpack.c.l.b16 %v1441
        %v1481 = vunpack.c.l.b16 %v1442
        %v1482 = vunpack.c.l.b16 %v1443
        %v1483 = vunpack.c.l.b16 %v1444
        %v1484 = vunpack.c.l.b16 %v1445
        %v1485 = vunpack.c.l.b16 %v1446
        %v1486 = vunpack.c.l.b16 %v1447
        %v1487 = vunpack.c.l.b16 %v1448
        %v1488 = vunpack.c.l.b16 %v1449
        %v1489 = vunpack.c.l.b16 %v1450
        %v1490 = vunpack.c.l.b16 %v1451
        %v1491 = vpack.c.b16 %v1476, %v1475
        %v1492 = vpack.c.b16 %v1478, %v1477
        %v1493 = vpack.c.b16 %v1480, %v1479
        %v1494 = vpack.c.b16 %v1482, %v1481
        %v1495 = vpack.c.b16 %v1484, %v1483
        %v1496 = vpack.c.b16 %v1486, %v1485
        %v1497 = vpack.c.b16 %v1488, %v1487
        %v1498 = vpack.c.b16 %v1490, %v1489
        %1507 = vmatprep.subr.bf16.mxu0 0
        %1508 = vmatpush1.bf16.msra.mxu0 %v1498
        %1509 = vmatprep.subr.bf16.mxu0 0
        %1510 = vmatpush1.bf16.msra.mxu0 %v1497
        %1511 = vmatprep.subr.bf16.mxu0 0
        %1512 = vmatpush1.bf16.msra.mxu0 %v1496
        %1513 = vmatprep.subr.bf16.mxu0 0
        %1514 = vmatpush1.bf16.msra.mxu0 %v1495
        %1515 = vmatprep.subr.bf16.mxu0 0
        %1516 = vmatpush1.bf16.msra.mxu0 %v1494
        %1517 = vmatprep.subr.bf16.mxu0 0
        %1518 = vmatpush1.bf16.msra.mxu0 %v1493
        %1519 = vmatprep.subr.bf16.mxu0 0
        %1520 = vmatpush1.bf16.msra.mxu0 %v1492
        %1521 = vmatprep.subr.bf16.mxu0 0
        %1522 = vmatpush1.bf16.msra.mxu0 %v1491
        %1523 = vmatprep.subr.bf16.mxu0 0
        %1524 = vmatpush2.bf16.msra.mxu0 0
        %1525 = vmatprep.subr.bf16.mxu0 0
        %1526 = vmatpush2.bf16.msra.mxu0 0
        %1527 = vmatprep.subr.bf16.mxu0 0
        %1528 = vmatpush2.bf16.msra.mxu0 0
        %1529 = vmatprep.subr.bf16.mxu0 0
        %1530 = vmatpush2.bf16.msra.mxu0 0
        %1531 = vmatprep.subr.bf16.mxu0 0
        %1532 = vmatpush2.bf16.msra.mxu0 0
        %1533 = vmatprep.subr.bf16.mxu0 0
        %1534 = vmatpush2.bf16.msra.mxu0 0
        %1535 = vmatprep.subr.bf16.mxu0 0
        %1536 = vmatpush2.bf16.msra.mxu0 0
        %1537 = vmatprep.subr.bf16.mxu0 0
        %1538 = vmatpush2.bf16.msra.mxu0 0
        %1539 = vmatprep.mubr.bf16.mxu0 0
        %1540 = vmatmul.mubr.bf16.gmra.mxu0 %v1420
        %v1541 = vpop.f32.mrf.mxu0
        %v1542 = vadd.f32 %v1457, %v1541
        %v1543 = vpop.f32.mrf.mxu0
        %v1544 = vpop.f32.mrf.mxu0
        %v1545 = vadd.f32 %v1457, %v1544
        %v1546 = vpop.f32.mrf.mxu0
        %1547 = vmatprep.mubr.bf16.mxu0 0
        %1548 = vmatmul.mubr.bf16.gmra.mxu0 %v1421
        %v1549 = vpop.f32.mrf.mxu0
        %v1550 = vadd.f32 %v1457, %v1549
        %v1551 = vpop.f32.mrf.mxu0
        %v1552 = vpop.f32.mrf.mxu0
        %v1553 = vadd.f32 %v1457, %v1552
        %v1554 = vpop.f32.mrf.mxu0
        %1555 = vmatprep.mubr.bf16.mxu0 0
        %1556 = vmatmul.mubr.bf16.gmra.mxu0 %v1422
        %v1557 = vpop.f32.mrf.mxu0
        %v1558 = vadd.f32 %v1457, %v1557
        %v1559 = vpop.f32.mrf.mxu0
        %v1560 = vpop.f32.mrf.mxu0
        %v1561 = vadd.f32 %v1457, %v1560
        %v1562 = vpop.f32.mrf.mxu0
        %1563 = vmatprep.mubr.bf16.mxu0 0
        %1564 = vmatmul.mubr.bf16.gmra.mxu0 %v1423
        %v1565 = vpop.f32.mrf.mxu0
        %v1566 = vadd.f32 %v1457, %v1565
        %v1567 = vpop.f32.mrf.mxu0
        %v1568 = vpop.f32.mrf.mxu0
        %v1569 = vadd.f32 %v1457, %v1568
        %v1570 = vpop.f32.mrf.mxu0
        %1571 = vmatprep.mubr.bf16.mxu0 0
        %1572 = vmatmul.mubr.bf16.gmra.mxu0 %v1424
        %v1573 = vpop.f32.mrf.mxu0
        %v1574 = vadd.f32 %v1457, %v1573
        %v1575 = vpop.f32.mrf.mxu0
        %v1576 = vpop.f32.mrf.mxu0
        %v1577 = vadd.f32 %v1457, %v1576
        %v1578 = vpop.f32.mrf.mxu0
        %1579 = vmatprep.mubr.bf16.mxu0 0
        %1580 = vmatmul.mubr.bf16.gmra.mxu0 %v1425
        %v1581 = vpop.f32.mrf.mxu0
        %v1582 = vadd.f32 %v1457, %v1581
        %v1583 = vpop.f32.mrf.mxu0
        %v1584 = vpop.f32.mrf.mxu0
        %v1585 = vadd.f32 %v1457, %v1584
        %v1586 = vpop.f32.mrf.mxu0
        %1587 = vmatprep.mubr.bf16.mxu0 0
        %1588 = vmatmul.mubr.bf16.gmra.mxu0 %v1426
        %v1589 = vpop.f32.mrf.mxu0
        %v1590 = vadd.f32 %v1457, %v1589
        %v1591 = vpop.f32.mrf.mxu0
        %v1592 = vpop.f32.mrf.mxu0
        %v1593 = vadd.f32 %v1457, %v1592
        %v1594 = vpop.f32.mrf.mxu0
        %1595 = vmatprep.mubr.bf16.mxu0 0
        %1596 = vmatmul.mubr.bf16.gmra.mxu0 %v1427
        %v1597 = vpop.f32.mrf.mxu0
        %v1598 = vadd.f32 %v1457, %v1597
        %v1599 = vpop.f32.mrf.mxu0
        %v1600 = vpop.f32.mrf.mxu0
        %v1601 = vadd.f32 %v1457, %v1600
        %v1602 = vpop.f32.mrf.mxu0
        %1603 = vmatprep.mubr.bf16.mxu0 0
        %1604 = vmatmul.mubr.bf16.gmra.mxu0 %v1428
        %v1605 = vpop.f32.mrf.mxu0
        %v1606 = vadd.f32 %v1457, %v1605
        %v1607 = vpop.f32.mrf.mxu0
        %v1608 = vpop.f32.mrf.mxu0
        %v1609 = vadd.f32 %v1457, %v1608
        %v1610 = vpop.f32.mrf.mxu0
        %1611 = vmatprep.mubr.bf16.mxu0 0
        %1612 = vmatmul.mubr.bf16.gmra.mxu0 %v1429
        %v1613 = vpop.f32.mrf.mxu0
        %v1614 = vadd.f32 %v1457, %v1613
        %v1615 = vpop.f32.mrf.mxu0
        %v1616 = vpop.f32.mrf.mxu0
        %v1617 = vadd.f32 %v1457, %v1616
        %v1618 = vpop.f32.mrf.mxu0
        %1619 = vmatprep.mubr.bf16.mxu0 0
        %1620 = vmatmul.mubr.bf16.gmra.mxu0 %v1430
        %v1621 = vpop.f32.mrf.mxu0
        %v1622 = vadd.f32 %v1457, %v1621
        %v1623 = vpop.f32.mrf.mxu0
        %v1624 = vpop.f32.mrf.mxu0
        %v1625 = vadd.f32 %v1457, %v1624
        %v1626 = vpop.f32.mrf.mxu0
        %1627 = vmatprep.mubr.bf16.mxu0 0
        %1628 = vmatmul.mubr.bf16.gmra.mxu0 %v1431
        %v1629 = vpop.f32.mrf.mxu0
        %v1630 = vadd.f32 %v1457, %v1629
        %v1631 = vpop.f32.mrf.mxu0
        %v1632 = vpop.f32.mrf.mxu0
        %v1633 = vadd.f32 %v1457, %v1632
        %v1634 = vpop.f32.mrf.mxu0
        %1635 = vmatprep.mubr.bf16.mxu0 0
        %1636 = vmatmul.mubr.bf16.gmra.mxu0 %v1432
        %v1637 = vpop.f32.mrf.mxu0
        %v1638 = vadd.f32 %v1457, %v1637
        %v1639 = vpop.f32.mrf.mxu0
        %v1640 = vpop.f32.mrf.mxu0
        %v1641 = vadd.f32 %v1457, %v1640
        %v1642 = vpop.f32.mrf.mxu0
        %1643 = vmatprep.mubr.bf16.mxu0 0
        %1644 = vmatmul.mubr.bf16.gmra.mxu0 %v1433
        %v1645 = vpop.f32.mrf.mxu0
        %v1646 = vadd.f32 %v1457, %v1645
        %v1647 = vpop.f32.mrf.mxu0
        %v1648 = vpop.f32.mrf.mxu0
        %v1649 = vadd.f32 %v1457, %v1648
        %v1650 = vpop.f32.mrf.mxu0
        %1651 = vmatprep.mubr.bf16.mxu0 0
        %1652 = vmatmul.mubr.bf16.gmra.mxu0 %v1434
        %v1653 = vpop.f32.mrf.mxu0
        %v1654 = vadd.f32 %v1457, %v1653
        %v1655 = vpop.f32.mrf.mxu0
        %v1656 = vpop.f32.mrf.mxu0
        %v1657 = vadd.f32 %v1457, %v1656
        %v1658 = vpop.f32.mrf.mxu0
        %1659 = vmatprep.mubr.bf16.mxu0 0
        %1660 = vmatmul.mubr.bf16.gmra.mxu0 %v1435
        %v1661 = vpop.f32.mrf.mxu0
        %v1662 = vadd.f32 %v1457, %v1661
        %v1663 = vpop.f32.mrf.mxu0
        %v1664 = vpop.f32.mrf.mxu0
        %v1665 = vadd.f32 %v1457, %v1664
        %v1666 = vpop.f32.mrf.mxu0
        %1667 = vdwg.mxu0
        %v1668 = vmul.f32 %v1542, %v1542
        %v1669 = vmul.f32 %v1545, %v1545
        %v1670 = vmul.f32 %v1550, %v1550
        %v1671 = vmul.f32 %v1553, %v1553
        %v1672 = vmul.f32 %v1558, %v1558
        %v1673 = vmul.f32 %v1561, %v1561
        %v1674 = vmul.f32 %v1566, %v1566
        %v1675 = vmul.f32 %v1569, %v1569
        %v1676 = vmul.f32 %v1574, %v1574
        %v1677 = vmul.f32 %v1577, %v1577
        %v1678 = vmul.f32 %v1582, %v1582
        %v1679 = vmul.f32 %v1585, %v1585
        %v1680 = vmul.f32 %v1590, %v1590
        %v1681 = vmul.f32 %v1593, %v1593
        %v1682 = vmul.f32 %v1598, %v1598
        %v1683 = vmul.f32 %v1601, %v1601
        %v1684 = vmul.f32 %v1606, %v1606
        %v1685 = vmul.f32 %v1609, %v1609
        %v1686 = vmul.f32 %v1614, %v1614
        %v1687 = vmul.f32 %v1617, %v1617
        %v1688 = vmul.f32 %v1622, %v1622
        %v1689 = vmul.f32 %v1625, %v1625
        %v1690 = vmul.f32 %v1630, %v1630
        %v1691 = vmul.f32 %v1633, %v1633
        %v1692 = vmul.f32 %v1638, %v1638
        %v1693 = vmul.f32 %v1641, %v1641
        %v1694 = vmul.f32 %v1646, %v1646
        %v1695 = vmul.f32 %v1649, %v1649
        %v1696 = vmul.f32 %v1654, %v1654
        %v1697 = vmul.f32 %v1657, %v1657
        %v1698 = vmul.f32 %v1662, %v1662
        %v1699 = vmul.f32 %v1665, %v1665
        %1700 = vadd.xlane.f32.xlu0 %v1668
        %v1701 = vpop.xlane.xlu0 %1700
        %1702 = vadd.xlane.f32.xlu0 %v1669
        %v1703 = vpop.xlane.xlu0 %1702
        %1704 = vadd.xlane.f32.xlu0 %v1670
        %v1705 = vpop.xlane.xlu0 %1704
        %1706 = vadd.xlane.f32.xlu0 %v1671
        %v1707 = vpop.xlane.xlu0 %1706
        %1708 = vadd.xlane.f32.xlu0 %v1672
        %v1709 = vpop.xlane.xlu0 %1708
        %1710 = vadd.xlane.f32.xlu0 %v1673
        %v1711 = vpop.xlane.xlu0 %1710
        %1712 = vadd.xlane.f32.xlu0 %v1674
        %v1713 = vpop.xlane.xlu0 %1712
        %1714 = vadd.xlane.f32.xlu0 %v1675
        %v1715 = vpop.xlane.xlu0 %1714
        %1716 = vadd.xlane.f32.xlu0 %v1676
        %v1717 = vpop.xlane.xlu0 %1716
        %1718 = vadd.xlane.f32.xlu0 %v1677
        %v1719 = vpop.xlane.xlu0 %1718
        %1720 = vadd.xlane.f32.xlu0 %v1678
        %v1721 = vpop.xlane.xlu0 %1720
        %1722 = vadd.xlane.f32.xlu0 %v1679
        %v1723 = vpop.xlane.xlu0 %1722
        %1724 = vadd.xlane.f32.xlu0 %v1680
        %v1725 = vpop.xlane.xlu0 %1724
        %1726 = vadd.xlane.f32.xlu0 %v1681
        %v1727 = vpop.xlane.xlu0 %1726
        %1728 = vadd.xlane.f32.xlu0 %v1682
        %v1729 = vpop.xlane.xlu0 %1728
        %1730 = vadd.xlane.f32.xlu0 %v1683
        %v1731 = vpop.xlane.xlu0 %1730
        %1732 = vadd.xlane.f32.xlu0 %v1684
        %v1733 = vpop.xlane.xlu0 %1732
        %1734 = vadd.xlane.f32.xlu0 %v1685
        %v1735 = vpop.xlane.xlu0 %1734
        %1736 = vadd.xlane.f32.xlu0 %v1686
        %v1737 = vpop.xlane.xlu0 %1736
        %1738 = vadd.xlane.f32.xlu0 %v1687
        %v1739 = vpop.xlane.xlu0 %1738
        %1740 = vadd.xlane.f32.xlu0 %v1688
        %v1741 = vpop.xlane.xlu0 %1740
        %1742 = vadd.xlane.f32.xlu0 %v1689
        %v1743 = vpop.xlane.xlu0 %1742
        %1744 = vadd.xlane.f32.xlu0 %v1690
        %v1745 = vpop.xlane.xlu0 %1744
        %1746 = vadd.xlane.f32.xlu0 %v1691
        %v1747 = vpop.xlane.xlu0 %1746
        %1748 = vadd.xlane.f32.xlu0 %v1692
        %v1749 = vpop.xlane.xlu0 %1748
        %1750 = vadd.xlane.f32.xlu0 %v1693
        %v1751 = vpop.xlane.xlu0 %1750
        %1752 = vadd.xlane.f32.xlu0 %v1694
        %v1753 = vpop.xlane.xlu0 %1752
        %1754 = vadd.xlane.f32.xlu0 %v1695
        %v1755 = vpop.xlane.xlu0 %1754
        %1756 = vadd.xlane.f32.xlu0 %v1696
        %v1757 = vpop.xlane.xlu0 %1756
        %1758 = vadd.xlane.f32.xlu0 %v1697
        %v1759 = vpop.xlane.xlu0 %1758
        %1760 = vadd.xlane.f32.xlu0 %v1698
        %v1761 = vpop.xlane.xlu0 %1760
        %1762 = vadd.xlane.f32.xlu0 %v1699
        %v1763 = vpop.xlane.xlu0 %1762
        %v1764 = vmax.f32 %v1701, 1e-24
        %v1765 = vmax.f32 %v1703, 1e-24
        %v1766 = vmax.f32 %v1705, 1e-24
        %v1767 = vmax.f32 %v1707, 1e-24
        %v1768 = vmax.f32 %v1709, 1e-24
        %v1769 = vmax.f32 %v1711, 1e-24
        %v1770 = vmax.f32 %v1713, 1e-24
        %v1771 = vmax.f32 %v1715, 1e-24
        %v1772 = vmax.f32 %v1717, 1e-24
        %v1773 = vmax.f32 %v1719, 1e-24
        %v1774 = vmax.f32 %v1721, 1e-24
        %v1775 = vmax.f32 %v1723, 1e-24
        %v1776 = vmax.f32 %v1725, 1e-24
        %v1777 = vmax.f32 %v1727, 1e-24
        %v1778 = vmax.f32 %v1729, 1e-24
        %v1779 = vmax.f32 %v1731, 1e-24
        %v1780 = vmax.f32 %v1733, 1e-24
        %v1781 = vmax.f32 %v1735, 1e-24
        %v1782 = vmax.f32 %v1737, 1e-24
        %v1783 = vmax.f32 %v1739, 1e-24
        %v1784 = vmax.f32 %v1741, 1e-24
        %v1785 = vmax.f32 %v1743, 1e-24
        %v1786 = vmax.f32 %v1745, 1e-24
        %v1787 = vmax.f32 %v1747, 1e-24
        %v1788 = vmax.f32 %v1749, 1e-24
        %v1789 = vmax.f32 %v1751, 1e-24
        %v1790 = vmax.f32 %v1753, 1e-24
        %v1791 = vmax.f32 %v1755, 1e-24
        %v1792 = vmax.f32 %v1757, 1e-24
        %v1793 = vmax.f32 %v1759, 1e-24
        %v1794 = vmax.f32 %v1761, 1e-24
        %v1795 = vmax.f32 %v1763, 1e-24
        %v1796 = vrsqrt.pop %v1764
        %v1797 = vrsqrt.pop %v1765
        %v1798 = vrsqrt.pop %v1766
        %v1799 = vrsqrt.pop %v1767
        %v1800 = vrsqrt.pop %v1768
        %v1801 = vrsqrt.pop %v1769
        %v1802 = vrsqrt.pop %v1770
        %v1803 = vrsqrt.pop %v1771
        %v1804 = vrsqrt.pop %v1772
        %v1805 = vrsqrt.pop %v1773
        %v1806 = vrsqrt.pop %v1774
        %v1807 = vrsqrt.pop %v1775
        %v1808 = vrsqrt.pop %v1776
        %v1809 = vrsqrt.pop %v1777
        %v1810 = vrsqrt.pop %v1778
        %v1811 = vrsqrt.pop %v1779
        %v1812 = vrsqrt.pop %v1780
        %v1813 = vrsqrt.pop %v1781
        %v1814 = vrsqrt.pop %v1782
        %v1815 = vrsqrt.pop %v1783
        %v1816 = vrsqrt.pop %v1784
        %v1817 = vrsqrt.pop %v1785
        %v1818 = vrsqrt.pop %v1786
        %v1819 = vrsqrt.pop %v1787
        %v1820 = vrsqrt.pop %v1788
        %v1821 = vrsqrt.pop %v1789
        %v1822 = vrsqrt.pop %v1790
        %v1823 = vrsqrt.pop %v1791
        %v1824 = vrsqrt.pop %v1792
        %v1825 = vrsqrt.pop %v1793
        %v1826 = vrsqrt.pop %v1794
        %v1827 = vrsqrt.pop %v1795
        %v1828 = vmul.f32 %v1796, 5.656854
        %v1829 = vmul.f32 %v1797, 5.656854
        %v1830 = vmul.f32 %v1798, 5.656854
        %v1831 = vmul.f32 %v1799, 5.656854
        %v1832 = vmul.f32 %v1800, 5.656854
        %v1833 = vmul.f32 %v1801, 5.656854
        %v1834 = vmul.f32 %v1802, 5.656854
        %v1835 = vmul.f32 %v1803, 5.656854
        %v1836 = vmul.f32 %v1804, 5.656854
        %v1837 = vmul.f32 %v1805, 5.656854
        %v1838 = vmul.f32 %v1806, 5.656854
        %v1839 = vmul.f32 %v1807, 5.656854
        %v1840 = vmul.f32 %v1808, 5.656854
        %v1841 = vmul.f32 %v1809, 5.656854
        %v1842 = vmul.f32 %v1810, 5.656854
        %v1843 = vmul.f32 %v1811, 5.656854
        %v1844 = vmul.f32 %v1812, 5.656854
        %v1845 = vmul.f32 %v1813, 5.656854
        %v1846 = vmul.f32 %v1814, 5.656854
        %v1847 = vmul.f32 %v1815, 5.656854
        %v1848 = vmul.f32 %v1816, 5.656854
        %v1849 = vmul.f32 %v1817, 5.656854
        %v1850 = vmul.f32 %v1818, 5.656854
        %v1851 = vmul.f32 %v1819, 5.656854
        %v1852 = vmul.f32 %v1820, 5.656854
        %v1853 = vmul.f32 %v1821, 5.656854
        %v1854 = vmul.f32 %v1822, 5.656854
        %v1855 = vmul.f32 %v1823, 5.656854
        %v1856 = vmul.f32 %v1824, 5.656854
        %v1857 = vmul.f32 %v1825, 5.656854
        %v1858 = vmul.f32 %v1826, 5.656854
        %v1859 = vmul.f32 %v1827, 5.656854
        %v1860 = vmul.f32 %v1542, %v1828
        %v1861 = vmul.f32 %v1545, %v1829
        %v1862 = vmul.f32 %v1550, %v1830
        %v1863 = vmul.f32 %v1553, %v1831
        %v1864 = vmul.f32 %v1558, %v1832
        %v1865 = vmul.f32 %v1561, %v1833
        %v1866 = vmul.f32 %v1566, %v1834
        %v1867 = vmul.f32 %v1569, %v1835
        %v1868 = vmul.f32 %v1574, %v1836
        %v1869 = vmul.f32 %v1577, %v1837
        %v1870 = vmul.f32 %v1582, %v1838
        %v1871 = vmul.f32 %v1585, %v1839
        %v1872 = vmul.f32 %v1590, %v1840
        %v1873 = vmul.f32 %v1593, %v1841
        %v1874 = vmul.f32 %v1598, %v1842
        %v1875 = vmul.f32 %v1601, %v1843
        %v1876 = vmul.f32 %v1606, %v1844
        %v1877 = vmul.f32 %v1609, %v1845
        %v1878 = vmul.f32 %v1614, %v1846
        %v1879 = vmul.f32 %v1617, %v1847
        %v1880 = vmul.f32 %v1622, %v1848
        %v1881 = vmul.f32 %v1625, %v1849
        %v1882 = vmul.f32 %v1630, %v1850
        %v1883 = vmul.f32 %v1633, %v1851
        %v1884 = vmul.f32 %v1638, %v1852
        %v1885 = vmul.f32 %v1641, %v1853
        %v1886 = vmul.f32 %v1646, %v1854
        %v1887 = vmul.f32 %v1649, %v1855
        %v1888 = vmul.f32 %v1654, %v1856
        %v1889 = vmul.f32 %v1657, %v1857
        %v1890 = vmul.f32 %v1662, %v1858
        %v1891 = vmul.f32 %v1665, %v1859
        %1892 = vst [vmem:[%s394] sm:$0xff] %v1860
        %1893 = vst [vmem:[%s394 + $0x8] sm:$0xff] %v1861
        %1894 = vst [vmem:[%s394 + $0x10] sm:$0xff] %v1862
        %1895 = vst [vmem:[%s394 + $0x18] sm:$0xff] %v1863
        %1896 = vst [vmem:[%s394 + $0x20] sm:$0xff] %v1864
        %1897 = vst [vmem:[%s394 + $0x28] sm:$0xff] %v1865
        %1898 = vst [vmem:[%s394 + $0x30] sm:$0xff] %v1866
        %1899 = vst [vmem:[%s394 + $0x38] sm:$0xff] %v1867
        %1900 = vst [vmem:[%s394 + $0x40] sm:$0xff] %v1868
        %1901 = vst [vmem:[%s394 + $0x48] sm:$0xff] %v1869
        %1902 = vst [vmem:[%s394 + $0x50] sm:$0xff] %v1870
        %1903 = vst [vmem:[%s394 + $0x58] sm:$0xff] %v1871
        %1904 = vst [vmem:[%s394 + $0x60] sm:$0xff] %v1872
        %1905 = vst [vmem:[%s394 + $0x68] sm:$0xff] %v1873
        %1906 = vst [vmem:[%s394 + $0x70] sm:$0xff] %v1874
        %1907 = vst [vmem:[%s394 + $0x78] sm:$0xff] %v1875
        %1908 = vst [vmem:[%s394 + $0x80] sm:$0xff] %v1876
        %1909 = vst [vmem:[%s394 + $0x88] sm:$0xff] %v1877
        %1910 = vst [vmem:[%s394 + $0x90] sm:$0xff] %v1878
        %1911 = vst [vmem:[%s394 + $0x98] sm:$0xff] %v1879
        %1912 = vst [vmem:[%s394 + $0xa0] sm:$0xff] %v1880
        %1913 = vst [vmem:[%s394 + $0xa8] sm:$0xff] %v1881
        %1914 = vst [vmem:[%s394 + $0xb0] sm:$0xff] %v1882
        %1915 = vst [vmem:[%s394 + $0xb8] sm:$0xff] %v1883
        %1916 = vst [vmem:[%s394 + $0xc0] sm:$0xff] %v1884
        %1917 = vst [vmem:[%s394 + $0xc8] sm:$0xff] %v1885
        %1918 = vst [vmem:[%s394 + $0xd0] sm:$0xff] %v1886
        %1919 = vst [vmem:[%s394 + $0xd8] sm:$0xff] %v1887
        %1920 = vst [vmem:[%s394 + $0xe0] sm:$0xff] %v1888
        %1921 = vst [vmem:[%s394 + $0xe8] sm:$0xff] %v1889
        %1922 = vst [vmem:[%s394 + $0xf0] sm:$0xff] %v1890
        %1923 = vst [vmem:[%s394 + $0xf8] sm:$0xff] %v1891
        %s1924 = sand.u32 %s230, 1
        %s1925 = scalar_lea.sflag [#allocation4], %s1924
        %s1926 = sand.u32 %s230, 1
        %s1927 = smul.addr %s1926, 256
        %s1928 = scalar_lea.vmem [#allocation10], %s1927
        // Predicated region
        $region73: #{tpu_custom_call.1} parent=55 // pred_check
          %p1929 = pneg %p240
        $region74: #{tpu_custom_call.1} parent=55 // pred_check_branch
          %1931 = sbr.rel (%p1929) target = $region76
        $region75: #{tpu_custom_call.1} parent=55 // pred_region
          %s1932 = smul.u32 32, %s28
          %s1934 = ssub.s32 4096, 4096
          %1935 = vsyncadd %s1925, %s1934
          %s1936 = smul.addr %s1932, 128
          %s1937 = scalar_lea.hbm %s9, %s1936
          %s1938 = sshll.u32 %s1928, 4
          %s1939 = int_to_ptr.vmem [resolvable:$true] %s1938
          %1944 = dma.vmem_to_hbm [thread:$0]  %s1939, 4096, %s1937, %s1925, 128, 128, 8
        $region76: #{tpu_custom_call.1} parent=55 // pred_fallthru
          _
      $region56: #{tpu_custom_call.1} parent=5 // pred_fallthru
        _
      %p1945 = scmp.le.s32.totalorder 2, %s23
      // Predicated region
      $region77: #{tpu_custom_call.1} parent=5 // pred_check
        %p1946 = pneg %p1945
      $region78: #{tpu_custom_call.1} parent=5 // pred_check_branch
        %1948 = sbr.rel (%p1946) target = $region80
      $region79: #{tpu_custom_call.1} parent=5 // pred_region
        %s1949 = ssub.s32 %s23, 2
        // Predicated region
        $region81: #{tpu_custom_call.1} parent=79 // pred_check
          %p1950 = pneg %p246
        $region82: #{tpu_custom_call.1} parent=79 // pred_check_branch
          %1952 = sbr.rel (%p1950) target = $region84
        $region83: #{tpu_custom_call.1} parent=79 // pred_region
          %s1953 = sand.u32 %s231, 1
          %s1954 = scalar_lea.sflag [#allocation4], %s1953
          %s1955 = sand.u32 %s231, 1
          %s1956 = smul.addr %s1955, 256
          %s1957 = scalar_lea.vmem [#allocation10], %s1956
          %1958 = dma.done %s1954, 4096
        $region84: #{tpu_custom_call.1} parent=79 // pred_fallthru
          _
      $region80: #{tpu_custom_call.1} parent=5 // pred_fallthru
        _
    $region6: #{tpu_custom_call.1} parent=1 // loop_footer
      %s27 = sadd.s32 1, %s23
    $region7: #{tpu_custom_call.1} parent=1 // loop_footer_branch
      %22 = sbr.rel target = $region3
    $region8: #{tpu_custom_call.1} parent=1 // loop_exit
      _
    %1959 = vsyncpa [#allocation3], 1
    %s1960 = scalar_lea.sflag [#allocation3], 1
    %1961 = vsyncpa %s1960, 1
    %1962 = vsyncpa [#allocation6], 1
    %1963 = vsyncpa [#allocation9], 1
    %1964 = vsyncpa [#allocation4], 1
    %s1965 = scalar_lea.sflag [#allocation4], 1
    %1966 = vsyncpa %s1965, 1

</llo_original>
